<compile_context>
chip_gen: v7x
topology: tpu7x:2x2x1
jax: 0.10.0
libtpu: 0.0.40
codegen_flags: <defaults>
</compile_context>

<pallas_src>
import functools

import jax
import jax.numpy as jnp
from jax.experimental import pallas as pl
from jax.experimental.pallas import tpu as pltpu


def _depth_head_kernel(x_ref, w1_ref, gmat_ref, gamma_ref, beta_ref,
                       w2_ref, b2_ref, o_ref, xpad_ref,
                       *, H, W, Cin, Cmid, eps, base):
    """One batch image per grid step.

    x_ref:     (1, Cin, H*W)    raw f32 image (NCHW with H,W flattened)
    w1_ref:    (3, Cmid, 3*Cin) 3x3 conv weight, [ky][out, kx*Cin + cin]
    gmat_ref:  (Cmid, Cmid) f32 group-averaging matrix (1/(HW*Cg) in-group)
    gamma_ref: (Cmid, 1)   f32  GroupNorm scale
    beta_ref:  (Cmid, 1)   f32  GroupNorm shift
    w2_ref:    (Cout, Cmid)     1x1 conv weight
    b2_ref:    (Cout, 1)   f32  1x1 conv bias
    o_ref:     (1, Cout, H*W)   output block (NCHW with H,W flattened)
    xpad_ref:  (Cin, P)         VMEM scratch: row-padded image, compute dtype
    """
    HW = H * W
    L = HW + 2 * W                     # window covering all three ky offsets
    P = xpad_ref.shape[1]
    cdt = xpad_ref.dtype

    # ---- In-kernel cast + H-padding into the persistent VMEM scratch. ----
    # Layout: zeros in [0, base), the H*W image at [base, base+HW) (base is a
    # lane multiple -> full-lane vst), zeros in [base+HW, P).  The small zero
    # strips are rewritten every step (cheap, megacore-safe: no reliance on a
    # program_id==0 init).
    xpad_ref[:, :base] = jnp.zeros((Cin, base), cdt)
    xpad_ref[:, base + HW:] = jnp.zeros((Cin, P - (base + HW)), cdt)
    xpad_ref[:, base:base + HW] = x_ref[0].astype(cdt)
    x = xpad_ref[...]                                       # (Cin, P)

    # ---- im2col front-end: 3 kx-shifted copies, 2 multiplicative masks. ----
    # Copy kx covers padded-flat positions [base-W-1+kx, base-W-1+kx+L).
    # Position j inside a copy is the tap value for output i = j - ky*W, whose
    # column is j % W (period W, identical for every ky), so each boundary
    # copy needs exactly one {0,1} mask.
    col = jax.lax.broadcasted_iota(jnp.int32, (1, L), 1) % W
    m_left = (col != 0).astype(cdt)          # kx=0 taps invalid at col 0
    m_right = (col != W - 1).astype(cdt)     # kx=2 taps invalid at col W-1
    s0 = base - W - 1
    xcat = jnp.concatenate([
        x[:, s0:s0 + L] * m_left,
        x[:, s0 + 1:s0 + 1 + L],
        x[:, s0 + 2:s0 + 2 + L] * m_right,
    ], axis=0)                                              # (3*Cin, L)

    # ---- 3x3 conv (pad=1, no bias): three accumulated K=3*Cin matmuls. ----
    acc = jnp.dot(w1_ref[0], xcat[:, 0:HW],
                  preferred_element_type=jnp.float32)       # (Cmid, HW) f32
    for ky in (1, 2):                                       # static unroll
        acc = acc + jnp.dot(w1_ref[ky], xcat[:, ky * W:ky * W + HW],
                            preferred_element_type=jnp.float32)

    # ---- GroupNorm(groups, Cmid): lane reductions + one tiny matmul. ----
    # Per-channel sums via XLU lane reductions, then ONE resident
    # (Cmid,Cmid)@(Cmid,2) matmul averages csum/csq within each group.
    # E[x^2]-E[x]^2 is clamped at 0 before rsqrt (cancellation guard; a
    # two-pass variance would track the reference tighter at the cost of an
    # extra HW sweep).
    csum = jnp.sum(acc, axis=1, keepdims=True)              # (Cmid, 1)
    csq = jnp.sum(acc * acc, axis=1, keepdims=True)         # (Cmid, 1)
    gstats = jnp.dot(gmat_ref[...], jnp.concatenate([csum, csq], axis=1),
                     preferred_element_type=jnp.float32)    # (Cmid, 2)
    mean_c = gstats[:, 0:1]
    var_c = jnp.maximum(gstats[:, 1:2] - mean_c * mean_c, 0.0)
    inv_c = jax.lax.rsqrt(var_c + eps)

    # Fused affine + ReLU: feat = max((acc - mean) * inv * gamma + beta, 0).
    scale_c = inv_c * gamma_ref[...]                        # (Cmid, 1)
    shift_c = beta_ref[...] - mean_c * scale_c              # (Cmid, 1)
    feat = jnp.maximum(acc * scale_c + shift_c, 0.0)        # (Cmid, HW) f32
    # Dropout(0.1): identity at inference.

    # ---- 1x1 conv with bias: (Cout, Cmid) @ (Cmid, HW) + (Cout, 1). ----
    out = jnp.dot(w2_ref[...], feat.astype(w2_ref.dtype),
                  preferred_element_type=jnp.float32) + b2_ref[...]
    o_ref[0] = out.astype(o_ref.dtype)                      # (Cout, HW)


@functools.partial(jax.jit, static_argnames=("groups", "eps", "compute_dtype",
                                              "out_dtype",
                                              "single_buffer_params"))
def _forward_impl(x_nchw, w1_oihw, gamma, beta, w2_oihw, b2, *, groups, eps,
                  compute_dtype, out_dtype, single_buffer_params):
    N, Cin, H, W = x_nchw.shape
    Cmid = w1_oihw.shape[0]
    Cout = w2_oihw.shape[0]
    assert Cmid % groups == 0, "GroupNorm(16, mid_chan) needs mid_chan % 16 == 0"
    Cg = Cmid // groups
    HW = H * W
    L = HW + 2 * W

    # Scratch layout: `base` is the lane-aligned offset of the unpadded image
    # inside the scratch; the two zero pad rows live just below / above it.
    base = pl.cdiv(W + 1, 128) * 128
    P = pl.cdiv(base + HW + W + 1, 128) * 128

    # Raw activation, free reshape (contiguous trailing dims).  Cast + padding
    # happen in-kernel -> no wrapper-side HBM round trip and one fewer launch.
    x_flat = x_nchw.reshape(N, Cin, HW)

    # (Cmid, Cin, 3, 3) -> (ky, Cmid, kx, Cin) -> (3, Cmid, 3*Cin); the column
    # order (kx, cin) matches the sublane order of xcat built in the kernel.
    w1k = jnp.transpose(w1_oihw, (2, 0, 3, 1)).reshape(3, Cmid, 3 * Cin)
    w1k = w1k.astype(compute_dtype)
    w2m = w2_oihw[:, :, 0, 0].astype(compute_dtype)          # (Cout, Cmid)
    gamma2 = gamma.reshape(Cmid, 1).astype(jnp.float32)
    beta2 = beta.reshape(Cmid, 1).astype(jnp.float32)
    b2m = b2.reshape(Cout, 1).astype(jnp.float32)

    # Group-averaging matrix: gmat[c, c'] = 1/(HW*Cg) if same group else 0.
    c_ids = jnp.arange(Cmid)
    same_group = (c_ids[:, None] // Cg) == (c_ids[None, :] // Cg)
    gmat = same_group.astype(jnp.float32) / float(HW * Cg)

    # Explicit VMEM budget for one grid step: double-buffered in/out blocks,
    # row-padded scratch, im2col copies, f32 acc/feat, parameter blocks.
    cb = jnp.dtype(compute_dtype).itemsize
    ob = jnp.dtype(out_dtype).itemsize
    pb = 1 if single_buffer_params else 2
    est = (2 * Cin * HW * 4 + 2 * Cout * HW * ob + Cin * P * cb
           + 4 * 3 * Cin * L * cb + 2 * Cmid * HW * 4
           + pb * ((9 * Cmid * Cin + Cout * Cmid) * cb
                   + (Cmid * Cmid + 2 * Cmid + 2 * Cout) * 4))
    vmem_limit = int(min(64 * 2 ** 20, max(32 * 2 ** 20, 2 * est)))

    def _const(shape):
        index_map = lambda b: (0,) * len(shape)
        if single_buffer_params:
            # Constant across grid steps: single-buffer to save VMEM.
            return pl.BlockSpec(shape, index_map, pipeline_mode=pl.Buffered(1))
        return pl.BlockSpec(shape, index_map)

    kernel = functools.partial(_depth_head_kernel, H=H, W=W, Cin=Cin,
                               Cmid=Cmid, eps=eps, base=base)

    out_flat = pl.pallas_call(
        kernel,
        out_shape=jax.ShapeDtypeStruct((N, Cout, HW), out_dtype),
        grid=(N,),
        in_specs=[
            pl.BlockSpec((1, Cin, HW), lambda b: (b, 0, 0)),
            _const((3, Cmid, 3 * Cin)),
            _const((Cmid, Cmid)),
            _const((Cmid, 1)),
            _const((Cmid, 1)),
            _const((Cout, Cmid)),
            _const((Cout, 1)),
        ],
        out_specs=pl.BlockSpec((1, Cout, HW), lambda b: (b, 0, 0)),
        scratch_shapes=[pltpu.VMEM((Cin, P), compute_dtype)],
        # TODO(synk): add a second "parallel" axis (spatial tiles / channel
        # groups) so both v7x TensorCores are busy when N == 1.
        compiler_params=pltpu.CompilerParams(
            dimension_semantics=("parallel",),
            vmem_limit_bytes=vmem_limit),
    )(x_flat, w1k, gmat, gamma2, beta2, w2m, b2m)

    # Free reshape of contiguous trailing dims: (N, Cout, H*W) -> NCHW.
    return out_flat.reshape(N, Cout, H, W)


def depth_head_forward(x_nchw, w1_oihw, gamma, beta, w2_oihw, b2, *,
                       groups=16, eps=1e-5, compute_dtype=jnp.bfloat16,
                       out_dtype=jnp.float32):
    """x_nchw: (N, Cin, H, W) f32. Returns (N, depth_bin_num, H, W) out_dtype."""
    kwargs = dict(groups=groups, eps=eps, compute_dtype=compute_dtype,
                  out_dtype=out_dtype)
    try:
        return _forward_impl(x_nchw, w1_oihw, gamma, beta, w2_oihw, b2,
                             single_buffer_params=True, **kwargs)
    except Exception:
        # pl.Buffered(1) single-buffering rejected by this jax build/backend:
        # fall back to default (double-buffered) parameter blocks.
        return _forward_impl(x_nchw, w1_oihw, gamma, beta, w2_oihw, b2,
                             single_buffer_params=False, **kwargs)


def _reference(x_nchw, w1_oihw, gamma, beta, w2_oihw, b2,
               *, groups=16, eps=1e-5, compute_dtype=jnp.float32):
    """Plain-JAX reference of the same forward pass (NCHW)."""
    cd = compute_dtype
    feat = jax.lax.conv_general_dilated(
        x_nchw.astype(cd), w1_oihw.astype(cd), window_strides=(1, 1),
        padding=((1, 1), (1, 1)), dimension_numbers=('NCHW', 'OIHW', 'NCHW'),
        preferred_element_type=jnp.float32)
    N, C, H, W = feat.shape
    f = feat.reshape(N, groups, C // groups, H, W)
    mean = f.mean(axis=(2, 3, 4), keepdims=True)
    var = f.var(axis=(2, 3, 4), keepdims=True)
    f = (f - mean) * jax.lax.rsqrt(var + eps)
    feat = f.reshape(N, C, H, W) * gamma[None, :, None, None] \
        + beta[None, :, None, None]
    feat = jnp.maximum(feat, 0.0)
    out = jax.lax.conv_general_dilated(
        feat.astype(cd), w2_oihw.astype(cd), window_strides=(1, 1),
        padding='VALID', dimension_numbers=('NCHW', 'OIHW', 'NCHW'),
        preferred_element_type=jnp.float32)
    return out + b2[None, :, None, None]


if __name__ == "__main__":
    # Small shapes consistent with the module: GroupNorm(16, mid_chan)
    # requires mid_chan % 16 == 0.
    N, Cin, H, W = 2, 16, 16, 16
    Cmid, Cout = 32, 16            # mid_chan, depth_bin_num

    key = jax.random.PRNGKey(0)
    k = jax.random.split(key, 6)
    x = jax.random.normal(k[0], (N, Cin, H, W), jnp.float32)
    w1 = jax.random.normal(k[1], (Cmid, Cin, 3, 3), jnp.float32) * 0.1
    gamma = 1.0 + 0.1 * jax.random.normal(k[2], (Cmid,), jnp.float32)
    beta = 0.1 * jax.random.normal(k[3], (Cmid,), jnp.float32)
    w2 = jax.random.normal(k[4], (Cout, Cmid, 1, 1), jnp.float32) * 0.1
    b2 = 0.1 * jax.random.normal(k[5], (Cout,), jnp.float32)

    # Default (optimized) bf16-MXU path vs a reference that applies the same
    # bf16 rounding to the matmul operands.
    out_bf = jax.block_until_ready(
        depth_head_forward(x, w1, gamma, beta, w2, b2))
    ref_bf = jax.block_until_ready(
        _reference(x, w1, gamma, beta, w2, b2, compute_dtype=jnp.bfloat16))
    assert out_bf.shape == (N, Cout, H, W), out_bf.shape
    assert jnp.allclose(out_bf, ref_bf, atol=1e-2, rtol=1e-2), \
        float(jnp.max(jnp.abs(out_bf - ref_bf)))

    # f32 path for a tight numerical check against the plain-f32 reference.
    out_f32 = jax.block_until_ready(
        depth_head_forward(x, w1, gamma, beta, w2, b2,
                           compute_dtype=jnp.float32))
    ref_f32 = jax.block_until_ready(_reference(x, w1, gamma, beta, w2, b2))
    assert jnp.allclose(out_f32, ref_f32, atol=2e-4, rtol=2e-4), \
        float(jnp.max(jnp.abs(out_f32 - ref_f32)))

    print("KERNEL_OK")
</pallas_src>

<mosaic_0001>
module attributes {stable_mosaic.version = 11 : i64} {
  func.func @_depth_head_kernel(%arg0: i32, %arg1: memref<1x16x256xf32, #tpu.memory_space<vmem>>, %arg2: memref<3x32x48xbf16, #tpu.memory_space<vmem>>, %arg3: memref<32x32xf32, #tpu.memory_space<vmem>>, %arg4: memref<32x1xf32, #tpu.memory_space<vmem>>, %arg5: memref<32x1xf32, #tpu.memory_space<vmem>>, %arg6: memref<16x32xbf16, #tpu.memory_space<vmem>>, %arg7: memref<16x1xf32, #tpu.memory_space<vmem>>, %arg8: memref<1x16x256xf32, #tpu.memory_space<vmem>>, %arg9: memref<16x512xbf16, #tpu.memory_space<vmem>>) attributes {dimension_semantics = [#tpu.dimension_semantics<parallel>], iteration_bounds = array<i64: 2>, scalar_prefetch = 0 : i64, scratch_operands = 1 : i64, tpu.core_type = #tpu.core_type<tc>, window_params = [{transform_indices = @transform_0, window_bounds = array<i64: 1, 16, 256>}, {pipeline_mode = #tpu.pipeline_mode<synchronous>, transform_indices = @transform_1, window_bounds = array<i64: 3, 32, 48>}, {pipeline_mode = #tpu.pipeline_mode<synchronous>, transform_indices = @transform_2, window_bounds = array<i64: 32, 32>}, {pipeline_mode = #tpu.pipeline_mode<synchronous>, transform_indices = @transform_3, window_bounds = array<i64: 32, 1>}, {pipeline_mode = #tpu.pipeline_mode<synchronous>, transform_indices = @transform_4, window_bounds = array<i64: 32, 1>}, {pipeline_mode = #tpu.pipeline_mode<synchronous>, transform_indices = @transform_5, window_bounds = array<i64: 16, 32>}, {pipeline_mode = #tpu.pipeline_mode<synchronous>, transform_indices = @transform_6, window_bounds = array<i64: 16, 1>}, {transform_indices = @transform_7, window_bounds = array<i64: 1, 16, 256>}]} {
    %cst = arith.constant 0.000000e+00 : bf16
    %0 = vector.broadcast %cst : bf16 to vector<16x128xbf16>
    %c0 = arith.constant 0 : index
    %c0_0 = arith.constant 0 : index
    %1 = vector.load %arg9[%c0, %c0_0] : memref<16x512xbf16, #tpu.memory_space<vmem>>, vector<16x128xbf16>
    tpu.vector_store %arg9[%c0, %c0_0], %0 {strides = array<i32>} : memref<16x512xbf16, #tpu.memory_space<vmem>>, vector<16x128xbf16>,
    %cst_1 = arith.constant 0.000000e+00 : bf16
    %2 = vector.broadcast %cst_1 : bf16 to vector<16x128xbf16>
    %c0_2 = arith.constant 0 : index
    %c384 = arith.constant 384 : index
    %3 = vector.load %arg9[%c0_2, %c384] : memref<16x512xbf16, #tpu.memory_space<vmem>>, vector<16x128xbf16>
    tpu.vector_store %arg9[%c0_2, %c384], %2 {strides = array<i32>} : memref<16x512xbf16, #tpu.memory_space<vmem>>, vector<16x128xbf16>,
    %c0_3 = arith.constant 0 : index
    %c0_4 = arith.constant 0 : index
    %c0_5 = arith.constant 0 : index
    %4 = vector.load %arg1[%c0_3, %c0_4, %c0_5] : memref<1x16x256xf32, #tpu.memory_space<vmem>>, vector<1x16x256xf32>
    %5 = vector.shape_cast %4 : vector<1x16x256xf32> to vector<16x256xf32>
    %6 = arith.truncf %5 : vector<16x256xf32> to vector<16x256xbf16>
    %c0_6 = arith.constant 0 : index
    %c128 = arith.constant 128 : index
    %7 = vector.load %arg9[%c0_6, %c128] : memref<16x512xbf16, #tpu.memory_space<vmem>>, vector<16x256xbf16>
    tpu.vector_store %arg9[%c0_6, %c128], %6 {strides = array<i32>} : memref<16x512xbf16, #tpu.memory_space<vmem>>, vector<16x256xbf16>,
    %c0_7 = arith.constant 0 : index
    %c0_8 = arith.constant 0 : index
    %8 = vector.load %arg9[%c0_7, %c0_8] : memref<16x512xbf16, #tpu.memory_space<vmem>>, vector<16x512xbf16>
    %9 = tpu.iota {dimensions = array<i32: 1>} : vector<1x288xi32>
    %c16_i32 = arith.constant 16 : i32
    %c0_i32 = arith.constant 0 : i32
    %10 = arith.cmpi eq, %c16_i32, %c0_i32 : i32
    %c1_i32 = arith.constant 1 : i32
    %11 = arith.select %10, %c1_i32, %c16_i32 : i32
    %12 = vector.broadcast %11 : i32 to vector<1x288xi32>
    %13 = arith.remsi %9, %12 : vector<1x288xi32>
    %c0_i32_9 = arith.constant 0 : i32
    %14 = vector.broadcast %c0_i32_9 : i32 to vector<1x288xi32>
    %15 = arith.cmpi ne, %13, %14 : vector<1x288xi32>
    %c0_i32_10 = arith.constant 0 : i32
    %16 = vector.broadcast %c0_i32_10 : i32 to vector<1x288xi32>
    %17 = arith.cmpi slt, %13, %16 : vector<1x288xi32>
    %c0_i32_11 = arith.constant 0 : i32
    %18 = arith.cmpi slt, %11, %c0_i32_11 : i32
    %19 = vector.broadcast %18 : i1 to vector<1x288xi1>
    %20 = vector.broadcast %19 : vector<1x288xi1> to vector<1x288xi1>
    %21 = arith.xori %17, %20 : vector<1x288xi1>
    %22 = arith.andi %21, %15 : vector<1x288xi1>
    %23 = vector.broadcast %11 : i32 to vector<1x288xi32>
    %24 = arith.addi %13, %23 : vector<1x288xi32>
    %25 = arith.select %22, %24, %13 : vector<1x288xi1>, vector<1x288xi32>
    %c0_i32_12 = arith.constant 0 : i32
    %26 = vector.broadcast %c0_i32_12 : i32 to vector<1x288xi32>
    %27 = arith.cmpi ne, %25, %26 : vector<1x288xi32>
    %28 = arith.extui %27 : vector<1x288xi1> to vector<1x288xi32>
    %29 = arith.sitofp %28 : vector<1x288xi32> to vector<1x288xf32>
    %30 = arith.truncf %29 : vector<1x288xf32> to vector<1x288xbf16>
    %c15_i32 = arith.constant 15 : i32
    %31 = vector.broadcast %c15_i32 : i32 to vector<1x288xi32>
    %32 = arith.cmpi ne, %25, %31 : vector<1x288xi32>
    %33 = arith.extui %32 : vector<1x288xi1> to vector<1x288xi32>
    %34 = arith.sitofp %33 : vector<1x288xi32> to vector<1x288xf32>
    %35 = arith.truncf %34 : vector<1x288xf32> to vector<1x288xbf16>
    %36 = vector.extract_strided_slice %8 {offsets = [0, 111], sizes = [16, 288], strides = [1, 1]} : vector<16x512xbf16> to vector<16x288xbf16>
    %37 = vector.broadcast %30 : vector<1x288xbf16> to vector<16x288xbf16>
    %38 = arith.mulf %36, %37 : vector<16x288xbf16>
    %39 = vector.extract_strided_slice %8 {offsets = [0, 112], sizes = [16, 288], strides = [1, 1]} : vector<16x512xbf16> to vector<16x288xbf16>
    %40 = vector.extract_strided_slice %8 {offsets = [0, 113], sizes = [16, 288], strides = [1, 1]} : vector<16x512xbf16> to vector<16x288xbf16>
    %41 = vector.broadcast %35 : vector<1x288xbf16> to vector<16x288xbf16>
    %42 = arith.mulf %40, %41 : vector<16x288xbf16>
    %43 = tpu.concatenate %38, %39, %42 in 0 : vector<16x288xbf16>, vector<16x288xbf16>, vector<16x288xbf16> -> vector<48x288xbf16>
    %c0_13 = arith.constant 0 : index
    %c0_14 = arith.constant 0 : index
    %c0_15 = arith.constant 0 : index
    %44 = vector.load %arg2[%c0_13, %c0_14, %c0_15] : memref<3x32x48xbf16, #tpu.memory_space<vmem>>, vector<1x32x48xbf16>
    %45 = vector.shape_cast %44 : vector<1x32x48xbf16> to vector<32x48xbf16>
    %46 = vector.extract_strided_slice %43 {offsets = [0, 0], sizes = [48, 256], strides = [1, 1]} : vector<48x288xbf16> to vector<48x256xbf16>
    %cst_16 = arith.constant dense<0.000000e+00> : vector<32x256xf32>
    %47 = tpu.matmul %45, %46, %cst_16 {dimension_numbers = #tpu.dot_dimension_numbers<[1], [0], [0], [1], [0, 0, 1, 1], [], []>} : vector<32x48xbf16>, vector<48x256xbf16>, vector<32x256xf32> -> vector<32x256xf32>
    %c1 = arith.constant 1 : index
    %c0_17 = arith.constant 0 : index
    %c0_18 = arith.constant 0 : index
    %48 = vector.load %arg2[%c1, %c0_17, %c0_18] : memref<3x32x48xbf16, #tpu.memory_space<vmem>>, vector<1x32x48xbf16>
    %49 = vector.shape_cast %48 : vector<1x32x48xbf16> to vector<32x48xbf16>
    %50 = vector.extract_strided_slice %43 {offsets = [0, 16], sizes = [48, 256], strides = [1, 1]} : vector<48x288xbf16> to vector<48x256xbf16>
    %cst_19 = arith.constant dense<0.000000e+00> : vector<32x256xf32>
    %51 = tpu.matmul %49, %50, %cst_19 {dimension_numbers = #tpu.dot_dimension_numbers<[1], [0], [0], [1], [0, 0, 1, 1], [], []>} : vector<32x48xbf16>, vector<48x256xbf16>, vector<32x256xf32> -> vector<32x256xf32>
    %52 = arith.addf %47, %51 : vector<32x256xf32>
    %c2 = arith.constant 2 : index
    %c0_20 = arith.constant 0 : index
    %c0_21 = arith.constant 0 : index
    %53 = vector.load %arg2[%c2, %c0_20, %c0_21] : memref<3x32x48xbf16, #tpu.memory_space<vmem>>, vector<1x32x48xbf16>
    %54 = vector.shape_cast %53 : vector<1x32x48xbf16> to vector<32x48xbf16>
    %55 = vector.extract_strided_slice %43 {offsets = [0, 32], sizes = [48, 256], strides = [1, 1]} : vector<48x288xbf16> to vector<48x256xbf16>
    %cst_22 = arith.constant dense<0.000000e+00> : vector<32x256xf32>
    %56 = tpu.matmul %54, %55, %cst_22 {dimension_numbers = #tpu.dot_dimension_numbers<[1], [0], [0], [1], [0, 0, 1, 1], [], []>} : vector<32x48xbf16>, vector<48x256xbf16>, vector<32x256xf32> -> vector<32x256xf32>
    %57 = arith.addf %52, %56 : vector<32x256xf32>
    %cst_23 = arith.constant dense<0.000000e+00> : vector<32xf32>
    %58 = vector.multi_reduction <add>, %57, %cst_23 [1] : vector<32x256xf32> to vector<32xf32>
    %59 = vector.shape_cast %58 : vector<32xf32> to vector<32x1xf32>
    %60 = arith.mulf %57, %57 : vector<32x256xf32>
    %cst_24 = arith.constant dense<0.000000e+00> : vector<32xf32>
    %61 = vector.multi_reduction <add>, %60, %cst_24 [1] : vector<32x256xf32> to vector<32xf32>
    %62 = vector.shape_cast %61 : vector<32xf32> to vector<32x1xf32>
    %c0_25 = arith.constant 0 : index
    %c0_26 = arith.constant 0 : index
    %63 = vector.load %arg3[%c0_25, %c0_26] : memref<32x32xf32, #tpu.memory_space<vmem>>, vector<32x32xf32>
    %64 = tpu.concatenate %59, %62 in 1 : vector<32x1xf32>, vector<32x1xf32> -> vector<32x2xf32>
    %cst_27 = arith.constant dense<0.000000e+00> : vector<32x2xf32>
    %65 = tpu.matmul %63, %64, %cst_27 {dimension_numbers = #tpu.dot_dimension_numbers<[1], [0], [0], [1], [0, 0, 1, 1], [], []>} : vector<32x32xf32>, vector<32x2xf32>, vector<32x2xf32> -> vector<32x2xf32>
    %66 = vector.extract_strided_slice %65 {offsets = [0, 0], sizes = [32, 1], strides = [1, 1]} : vector<32x2xf32> to vector<32x1xf32>
    %67 = vector.extract_strided_slice %65 {offsets = [0, 1], sizes = [32, 1], strides = [1, 1]} : vector<32x2xf32> to vector<32x1xf32>
    %68 = arith.mulf %66, %66 : vector<32x1xf32>
    %69 = arith.subf %67, %68 : vector<32x1xf32>
    %cst_28 = arith.constant 0.000000e+00 : f32
    %70 = vector.broadcast %cst_28 : f32 to vector<32x1xf32>
    %71 = arith.maximumf %69, %70 : vector<32x1xf32>
    %cst_29 = arith.constant 9.99999974E-6 : f32
    %72 = vector.broadcast %cst_29 : f32 to vector<32x1xf32>
    %73 = arith.addf %71, %72 : vector<32x1xf32>
    %74 = math.rsqrt %73 : vector<32x1xf32>
    %c0_30 = arith.constant 0 : index
    %c0_31 = arith.constant 0 : index
    %75 = vector.load %arg4[%c0_30, %c0_31] : memref<32x1xf32, #tpu.memory_space<vmem>>, vector<32x1xf32>
    %76 = arith.mulf %74, %75 : vector<32x1xf32>
    %c0_32 = arith.constant 0 : index
    %c0_33 = arith.constant 0 : index
    %77 = vector.load %arg5[%c0_32, %c0_33] : memref<32x1xf32, #tpu.memory_space<vmem>>, vector<32x1xf32>
    %78 = arith.mulf %66, %76 : vector<32x1xf32>
    %79 = arith.subf %77, %78 : vector<32x1xf32>
    %80 = vector.broadcast %76 : vector<32x1xf32> to vector<32x256xf32>
    %81 = arith.mulf %57, %80 : vector<32x256xf32>
    %82 = vector.broadcast %79 : vector<32x1xf32> to vector<32x256xf32>
    %83 = arith.addf %81, %82 : vector<32x256xf32>
    %cst_34 = arith.constant 0.000000e+00 : f32
    %84 = vector.broadcast %cst_34 : f32 to vector<32x256xf32>
    %85 = arith.maximumf %83, %84 : vector<32x256xf32>
    %c0_35 = arith.constant 0 : index
    %c0_36 = arith.constant 0 : index
    %86 = vector.load %arg6[%c0_35, %c0_36] : memref<16x32xbf16, #tpu.memory_space<vmem>>, vector<16x32xbf16>
    %87 = arith.truncf %85 : vector<32x256xf32> to vector<32x256xbf16>
    %cst_37 = arith.constant dense<0.000000e+00> : vector<16x256xf32>
    %88 = tpu.matmul %86, %87, %cst_37 {dimension_numbers = #tpu.dot_dimension_numbers<[1], [0], [0], [1], [0, 0, 1, 1], [], []>} : vector<16x32xbf16>, vector<32x256xbf16>, vector<16x256xf32> -> vector<16x256xf32>
    %c0_38 = arith.constant 0 : index
    %c0_39 = arith.constant 0 : index
    %89 = vector.load %arg7[%c0_38, %c0_39] : memref<16x1xf32, #tpu.memory_space<vmem>>, vector<16x1xf32>
    %90 = vector.broadcast %89 : vector<16x1xf32> to vector<16x256xf32>
    %91 = arith.addf %88, %90 : vector<16x256xf32>
    %c0_40 = arith.constant 0 : index
    %c0_41 = arith.constant 0 : index
    %c0_42 = arith.constant 0 : index
    %92 = vector.load %arg8[%c0_40, %c0_41, %c0_42] : memref<1x16x256xf32, #tpu.memory_space<vmem>>, vector<1x16x256xf32>
    %93 = vector.shape_cast %92 : vector<1x16x256xf32> to vector<16x256xf32>
    %94 = vector.shape_cast %91 : vector<16x256xf32> to vector<1x16x256xf32>
    tpu.vector_store %arg8[%c0_40, %c0_41, %c0_42], %94 {strides = array<i32>} : memref<1x16x256xf32, #tpu.memory_space<vmem>>, vector<1x16x256xf32>,
    return
  }
  func.func @transform_0(%arg0: i32) -> (i32, i32, i32) {
    %c0_i32 = arith.constant 0 : i32
    %c0_i32_0 = arith.constant 0 : i32
    %c0_i32_1 = arith.constant 0 : i32
    return %arg0, %c0_i32, %c0_i32_0 : i32, i32, i32
  }
  func.func @transform_1(%arg0: i32) -> (i32, i32, i32) {
    %c0_i32 = arith.constant 0 : i32
    %c0_i32_0 = arith.constant 0 : i32
    %c0_i32_1 = arith.constant 0 : i32
    %c0_i32_2 = arith.constant 0 : i32
    return %c0_i32, %c0_i32_0, %c0_i32_1 : i32, i32, i32
  }
  func.func @transform_2(%arg0: i32) -> (i32, i32) {
    %c0_i32 = arith.constant 0 : i32
    %c0_i32_0 = arith.constant 0 : i32
    %c0_i32_1 = arith.constant 0 : i32
    return %c0_i32, %c0_i32_0 : i32, i32
  }
  func.func @transform_3(%arg0: i32) -> (i32, i32) {
    %c0_i32 = arith.constant 0 : i32
    %c0_i32_0 = arith.constant 0 : i32
    %c0_i32_1 = arith.constant 0 : i32
    return %c0_i32, %c0_i32_0 : i32, i32
  }
  func.func @transform_4(%arg0: i32) -> (i32, i32) {
    %c0_i32 = arith.constant 0 : i32
    %c0_i32_0 = arith.constant 0 : i32
    %c0_i32_1 = arith.constant 0 : i32
    return %c0_i32, %c0_i32_0 : i32, i32
  }
  func.func @transform_5(%arg0: i32) -> (i32, i32) {
    %c0_i32 = arith.constant 0 : i32
    %c0_i32_0 = arith.constant 0 : i32
    %c0_i32_1 = arith.constant 0 : i32
    return %c0_i32, %c0_i32_0 : i32, i32
  }
  func.func @transform_6(%arg0: i32) -> (i32, i32) {
    %c0_i32 = arith.constant 0 : i32
    %c0_i32_0 = arith.constant 0 : i32
    %c0_i32_1 = arith.constant 0 : i32
    return %c0_i32, %c0_i32_0 : i32, i32
  }
  func.func @transform_7(%arg0: i32) -> (i32, i32, i32) {
    %c0_i32 = arith.constant 0 : i32
    %c0_i32_0 = arith.constant 0 : i32
    %c0_i32_1 = arith.constant 0 : i32
    return %arg0, %c0_i32, %c0_i32_0 : i32, i32, i32
  }
}

module attributes {stable_mosaic.version = 11 : i64} {
  func.func @_depth_head_kernel(%arg0: i32, %arg1: memref<1x16x256xf32, #tpu.memory_space<vmem>>, %arg2: memref<3x32x48xbf16, #tpu.memory_space<vmem>>, %arg3: memref<32x32xf32, #tpu.memory_space<vmem>>, %arg4: memref<32x1xf32, #tpu.memory_space<vmem>>, %arg5: memref<32x1xf32, #tpu.memory_space<vmem>>, %arg6: memref<16x32xbf16, #tpu.memory_space<vmem>>, %arg7: memref<16x1xf32, #tpu.memory_space<vmem>>, %arg8: memref<1x16x256xf32, #tpu.memory_space<vmem>>, %arg9: memref<16x512xbf16, #tpu.memory_space<vmem>>) attributes {dimension_semantics = [#tpu.dimension_semantics<parallel>], iteration_bounds = array<i64: 2>, scalar_prefetch = 0 : i64, scratch_operands = 1 : i64, tpu.core_type = #tpu.core_type<tc>, window_params = [{transform_indices = @transform_0, window_bounds = array<i64: 1, 16, 256>}, {pipeline_mode = #tpu.pipeline_mode<synchronous>, transform_indices = @transform_1, window_bounds = array<i64: 3, 32, 48>}, {pipeline_mode = #tpu.pipeline_mode<synchronous>, transform_indices = @transform_2, window_bounds = array<i64: 32, 32>}, {pipeline_mode = #tpu.pipeline_mode<synchronous>, transform_indices = @transform_3, window_bounds = array<i64: 32, 1>}, {pipeline_mode = #tpu.pipeline_mode<synchronous>, transform_indices = @transform_4, window_bounds = array<i64: 32, 1>}, {pipeline_mode = #tpu.pipeline_mode<synchronous>, transform_indices = @transform_5, window_bounds = array<i64: 16, 32>}, {pipeline_mode = #tpu.pipeline_mode<synchronous>, transform_indices = @transform_6, window_bounds = array<i64: 16, 1>}, {transform_indices = @transform_7, window_bounds = array<i64: 1, 16, 256>}]} {
    %cst = arith.constant 0.000000e+00 : bf16
    %0 = vector.broadcast %cst : bf16 to vector<16x128xbf16>
    %c0 = arith.constant 0 : index
    %c0_0 = arith.constant 0 : index
    %1 = vector.load %arg9[%c0, %c0_0] : memref<16x512xbf16, #tpu.memory_space<vmem>>, vector<16x128xbf16>
    tpu.vector_store %arg9[%c0, %c0_0], %0 {strides = array<i32>} : memref<16x512xbf16, #tpu.memory_space<vmem>>, vector<16x128xbf16>,
    %cst_1 = arith.constant 0.000000e+00 : bf16
    %2 = vector.broadcast %cst_1 : bf16 to vector<16x128xbf16>
    %c0_2 = arith.constant 0 : index
    %c384 = arith.constant 384 : index
    %3 = vector.load %arg9[%c0_2, %c384] : memref<16x512xbf16, #tpu.memory_space<vmem>>, vector<16x128xbf16>
    tpu.vector_store %arg9[%c0_2, %c384], %2 {strides = array<i32>} : memref<16x512xbf16, #tpu.memory_space<vmem>>, vector<16x128xbf16>,
    %c0_3 = arith.constant 0 : index
    %c0_4 = arith.constant 0 : index
    %c0_5 = arith.constant 0 : index
    %4 = vector.load %arg1[%c0_3, %c0_4, %c0_5] : memref<1x16x256xf32, #tpu.memory_space<vmem>>, vector<1x16x256xf32>
    %5 = vector.shape_cast %4 : vector<1x16x256xf32> to vector<16x256xf32>
    %6 = arith.truncf %5 : vector<16x256xf32> to vector<16x256xbf16>
    %c0_6 = arith.constant 0 : index
    %c128 = arith.constant 128 : index
    %7 = vector.load %arg9[%c0_6, %c128] : memref<16x512xbf16, #tpu.memory_space<vmem>>, vector<16x256xbf16>
    tpu.vector_store %arg9[%c0_6, %c128], %6 {strides = array<i32>} : memref<16x512xbf16, #tpu.memory_space<vmem>>, vector<16x256xbf16>,
    %c0_7 = arith.constant 0 : index
    %c0_8 = arith.constant 0 : index
    %8 = vector.load %arg9[%c0_7, %c0_8] : memref<16x512xbf16, #tpu.memory_space<vmem>>, vector<16x512xbf16>
    %9 = tpu.iota {dimensions = array<i32: 1>} : vector<1x288xi32>
    %c16_i32 = arith.constant 16 : i32
    %c0_i32 = arith.constant 0 : i32
    %10 = arith.cmpi eq, %c16_i32, %c0_i32 : i32
    %c1_i32 = arith.constant 1 : i32
    %11 = arith.select %10, %c1_i32, %c16_i32 : i32
    %12 = vector.broadcast %11 : i32 to vector<1x288xi32>
    %13 = arith.remsi %9, %12 : vector<1x288xi32>
    %c0_i32_9 = arith.constant 0 : i32
    %14 = vector.broadcast %c0_i32_9 : i32 to vector<1x288xi32>
    %15 = arith.cmpi ne, %13, %14 : vector<1x288xi32>
    %c0_i32_10 = arith.constant 0 : i32
    %16 = vector.broadcast %c0_i32_10 : i32 to vector<1x288xi32>
    %17 = arith.cmpi slt, %13, %16 : vector<1x288xi32>
    %c0_i32_11 = arith.constant 0 : i32
    %18 = arith.cmpi slt, %11, %c0_i32_11 : i32
    %19 = vector.broadcast %18 : i1 to vector<1x288xi1>
    %20 = vector.broadcast %19 : vector<1x288xi1> to vector<1x288xi1>
    %21 = arith.xori %17, %20 : vector<1x288xi1>
    %22 = arith.andi %21, %15 : vector<1x288xi1>
    %23 = vector.broadcast %11 : i32 to vector<1x288xi32>
    %24 = arith.addi %13, %23 : vector<1x288xi32>
    %25 = arith.select %22, %24, %13 : vector<1x288xi1>, vector<1x288xi32>
    %c0_i32_12 = arith.constant 0 : i32
    %26 = vector.broadcast %c0_i32_12 : i32 to vector<1x288xi32>
    %27 = arith.cmpi ne, %25, %26 : vector<1x288xi32>
    %28 = arith.extui %27 : vector<1x288xi1> to vector<1x288xi32>
    %29 = arith.sitofp %28 : vector<1x288xi32> to vector<1x288xf32>
    %30 = arith.truncf %29 : vector<1x288xf32> to vector<1x288xbf16>
    %c15_i32 = arith.constant 15 : i32
    %31 = vector.broadcast %c15_i32 : i32 to vector<1x288xi32>
    %32 = arith.cmpi ne, %25, %31 : vector<1x288xi32>
    %33 = arith.extui %32 : vector<1x288xi1> to vector<1x288xi32>
    %34 = arith.sitofp %33 : vector<1x288xi32> to vector<1x288xf32>
    %35 = arith.truncf %34 : vector<1x288xf32> to vector<1x288xbf16>
    %36 = vector.extract_strided_slice %8 {offsets = [0, 111], sizes = [16, 288], strides = [1, 1]} : vector<16x512xbf16> to vector<16x288xbf16>
    %37 = vector.broadcast %30 : vector<1x288xbf16> to vector<16x288xbf16>
    %38 = arith.mulf %36, %37 : vector<16x288xbf16>
    %39 = vector.extract_strided_slice %8 {offsets = [0, 112], sizes = [16, 288], strides = [1, 1]} : vector<16x512xbf16> to vector<16x288xbf16>
    %40 = vector.extract_strided_slice %8 {offsets = [0, 113], sizes = [16, 288], strides = [1, 1]} : vector<16x512xbf16> to vector<16x288xbf16>
    %41 = vector.broadcast %35 : vector<1x288xbf16> to vector<16x288xbf16>
    %42 = arith.mulf %40, %41 : vector<16x288xbf16>
    %43 = tpu.concatenate %38, %39, %42 in 0 : vector<16x288xbf16>, vector<16x288xbf16>, vector<16x288xbf16> -> vector<48x288xbf16>
    %c0_13 = arith.constant 0 : index
    %c0_14 = arith.constant 0 : index
    %c0_15 = arith.constant 0 : index
    %44 = vector.load %arg2[%c0_13, %c0_14, %c0_15] : memref<3x32x48xbf16, #tpu.memory_space<vmem>>, vector<1x32x48xbf16>
    %45 = vector.shape_cast %44 : vector<1x32x48xbf16> to vector<32x48xbf16>
    %46 = vector.extract_strided_slice %43 {offsets = [0, 0], sizes = [48, 256], strides = [1, 1]} : vector<48x288xbf16> to vector<48x256xbf16>
    %cst_16 = arith.constant dense<0.000000e+00> : vector<32x256xf32>
    %47 = tpu.matmul %45, %46, %cst_16 {dimension_numbers = #tpu.dot_dimension_numbers<[1], [0], [0], [1], [0, 0, 1, 1], [], []>} : vector<32x48xbf16>, vector<48x256xbf16>, vector<32x256xf32> -> vector<32x256xf32>
    %c1 = arith.constant 1 : index
    %c0_17 = arith.constant 0 : index
    %c0_18 = arith.constant 0 : index
    %48 = vector.load %arg2[%c1, %c0_17, %c0_18] : memref<3x32x48xbf16, #tpu.memory_space<vmem>>, vector<1x32x48xbf16>
    %49 = vector.shape_cast %48 : vector<1x32x48xbf16> to vector<32x48xbf16>
    %50 = vector.extract_strided_slice %43 {offsets = [0, 16], sizes = [48, 256], strides = [1, 1]} : vector<48x288xbf16> to vector<48x256xbf16>
    %cst_19 = arith.constant dense<0.000000e+00> : vector<32x256xf32>
    %51 = tpu.matmul %49, %50, %cst_19 {dimension_numbers = #tpu.dot_dimension_numbers<[1], [0], [0], [1], [0, 0, 1, 1], [], []>} : vector<32x48xbf16>, vector<48x256xbf16>, vector<32x256xf32> -> vector<32x256xf32>
    %52 = arith.addf %47, %51 : vector<32x256xf32>
    %c2 = arith.constant 2 : index
    %c0_20 = arith.constant 0 : index
    %c0_21 = arith.constant 0 : index
    %53 = vector.load %arg2[%c2, %c0_20, %c0_21] : memref<3x32x48xbf16, #tpu.memory_space<vmem>>, vector<1x32x48xbf16>
    %54 = vector.shape_cast %53 : vector<1x32x48xbf16> to vector<32x48xbf16>
    %55 = vector.extract_strided_slice %43 {offsets = [0, 32], sizes = [48, 256], strides = [1, 1]} : vector<48x288xbf16> to vector<48x256xbf16>
    %cst_22 = arith.constant dense<0.000000e+00> : vector<32x256xf32>
    %56 = tpu.matmul %54, %55, %cst_22 {dimension_numbers = #tpu.dot_dimension_numbers<[1], [0], [0], [1], [0, 0, 1, 1], [], []>} : vector<32x48xbf16>, vector<48x256xbf16>, vector<32x256xf32> -> vector<32x256xf32>
    %57 = arith.addf %52, %56 : vector<32x256xf32>
    %cst_23 = arith.constant dense<0.000000e+00> : vector<32xf32>
    %58 = vector.multi_reduction <add>, %57, %cst_23 [1] : vector<32x256xf32> to vector<32xf32>
    %59 = vector.shape_cast %58 : vector<32xf32> to vector<32x1xf32>
    %60 = arith.mulf %57, %57 : vector<32x256xf32>
    %cst_24 = arith.constant dense<0.000000e+00> : vector<32xf32>
    %61 = vector.multi_reduction <add>, %60, %cst_24 [1] : vector<32x256xf32> to vector<32xf32>
    %62 = vector.shape_cast %61 : vector<32xf32> to vector<32x1xf32>
    %c0_25 = arith.constant 0 : index
    %c0_26 = arith.constant 0 : index
    %63 = vector.load %arg3[%c0_25, %c0_26] : memref<32x32xf32, #tpu.memory_space<vmem>>, vector<32x32xf32>
    %64 = tpu.concatenate %59, %62 in 1 : vector<32x1xf32>, vector<32x1xf32> -> vector<32x2xf32>
    %cst_27 = arith.constant dense<0.000000e+00> : vector<32x2xf32>
    %65 = tpu.matmul %63, %64, %cst_27 {dimension_numbers = #tpu.dot_dimension_numbers<[1], [0], [0], [1], [0, 0, 1, 1], [], []>} : vector<32x32xf32>, vector<32x2xf32>, vector<32x2xf32> -> vector<32x2xf32>
    %66 = vector.extract_strided_slice %65 {offsets = [0, 0], sizes = [32, 1], strides = [1, 1]} : vector<32x2xf32> to vector<32x1xf32>
    %67 = vector.extract_strided_slice %65 {offsets = [0, 1], sizes = [32, 1], strides = [1, 1]} : vector<32x2xf32> to vector<32x1xf32>
    %68 = arith.mulf %66, %66 : vector<32x1xf32>
    %69 = arith.subf %67, %68 : vector<32x1xf32>
    %cst_28 = arith.constant 0.000000e+00 : f32
    %70 = vector.broadcast %cst_28 : f32 to vector<32x1xf32>
    %71 = arith.maximumf %69, %70 : vector<32x1xf32>
    %cst_29 = arith.constant 9.99999974E-6 : f32
    %72 = vector.broadcast %cst_29 : f32 to vector<32x1xf32>
    %73 = arith.addf %71, %72 : vector<32x1xf32>
    %74 = math.rsqrt %73 : vector<32x1xf32>
    %c0_30 = arith.constant 0 : index
    %c0_31 = arith.constant 0 : index
    %75 = vector.load %arg4[%c0_30, %c0_31] : memref<32x1xf32, #tpu.memory_space<vmem>>, vector<32x1xf32>
    %76 = arith.mulf %74, %75 : vector<32x1xf32>
    %c0_32 = arith.constant 0 : index
    %c0_33 = arith.constant 0 : index
    %77 = vector.load %arg5[%c0_32, %c0_33] : memref<32x1xf32, #tpu.memory_space<vmem>>, vector<32x1xf32>
    %78 = arith.mulf %66, %76 : vector<32x1xf32>
    %79 = arith.subf %77, %78 : vector<32x1xf32>
    %80 = vector.broadcast %76 : vector<32x1xf32> to vector<32x256xf32>
    %81 = arith.mulf %57, %80 : vector<32x256xf32>
    %82 = vector.broadcast %79 : vector<32x1xf32> to vector<32x256xf32>
    %83 = arith.addf %81, %82 : vector<32x256xf32>
    %cst_34 = arith.constant 0.000000e+00 : f32
    %84 = vector.broadcast %cst_34 : f32 to vector<32x256xf32>
    %85 = arith.maximumf %83, %84 : vector<32x256xf32>
    %c0_35 = arith.constant 0 : index
    %c0_36 = arith.constant 0 : index
    %86 = vector.load %arg6[%c0_35, %c0_36] : memref<16x32xbf16, #tpu.memory_space<vmem>>, vector<16x32xbf16>
    %87 = arith.truncf %85 : vector<32x256xf32> to vector<32x256xbf16>
    %cst_37 = arith.constant dense<0.000000e+00> : vector<16x256xf32>
    %88 = tpu.matmul %86, %87, %cst_37 {dimension_numbers = #tpu.dot_dimension_numbers<[1], [0], [0], [1], [0, 0, 1, 1], [], []>} : vector<16x32xbf16>, vector<32x256xbf16>, vector<16x256xf32> -> vector<16x256xf32>
    %c0_38 = arith.constant 0 : index
    %c0_39 = arith.constant 0 : index
    %89 = vector.load %arg7[%c0_38, %c0_39] : memref<16x1xf32, #tpu.memory_space<vmem>>, vector<16x1xf32>
    %90 = vector.broadcast %89 : vector<16x1xf32> to vector<16x256xf32>
    %91 = arith.addf %88, %90 : vector<16x256xf32>
    %c0_40 = arith.constant 0 : index
    %c0_41 = arith.constant 0 : index
    %c0_42 = arith.constant 0 : index
    %92 = vector.load %arg8[%c0_40, %c0_41, %c0_42] : memref<1x16x256xf32, #tpu.memory_space<vmem>>, vector<1x16x256xf32>
    %93 = vector.shape_cast %92 : vector<1x16x256xf32> to vector<16x256xf32>
    %94 = vector.shape_cast %91 : vector<16x256xf32> to vector<1x16x256xf32>
    tpu.vector_store %arg8[%c0_40, %c0_41, %c0_42], %94 {strides = array<i32>} : memref<1x16x256xf32, #tpu.memory_space<vmem>>, vector<1x16x256xf32>,
    return
  }
  func.func @transform_0(%arg0: i32) -> (i32, i32, i32) {
    %c0_i32 = arith.constant 0 : i32
    %c0_i32_0 = arith.constant 0 : i32
    %c0_i32_1 = arith.constant 0 : i32
    return %arg0, %c0_i32, %c0_i32_0 : i32, i32, i32
  }
  func.func @transform_1(%arg0: i32) -> (i32, i32, i32) {
    %c0_i32 = arith.constant 0 : i32
    %c0_i32_0 = arith.constant 0 : i32
    %c0_i32_1 = arith.constant 0 : i32
    %c0_i32_2 = arith.constant 0 : i32
    return %c0_i32, %c0_i32_0, %c0_i32_1 : i32, i32, i32
  }
  func.func @transform_2(%arg0: i32) -> (i32, i32) {
    %c0_i32 = arith.constant 0 : i32
    %c0_i32_0 = arith.constant 0 : i32
    %c0_i32_1 = arith.constant 0 : i32
    return %c0_i32, %c0_i32_0 : i32, i32
  }
  func.func @transform_3(%arg0: i32) -> (i32, i32) {
    %c0_i32 = arith.constant 0 : i32
    %c0_i32_0 = arith.constant 0 : i32
    %c0_i32_1 = arith.constant 0 : i32
    return %c0_i32, %c0_i32_0 : i32, i32
  }
  func.func @transform_4(%arg0: i32) -> (i32, i32) {
    %c0_i32 = arith.constant 0 : i32
    %c0_i32_0 = arith.constant 0 : i32
    %c0_i32_1 = arith.constant 0 : i32
    return %c0_i32, %c0_i32_0 : i32, i32
  }
  func.func @transform_5(%arg0: i32) -> (i32, i32) {
    %c0_i32 = arith.constant 0 : i32
    %c0_i32_0 = arith.constant 0 : i32
    %c0_i32_1 = arith.constant 0 : i32
    return %c0_i32, %c0_i32_0 : i32, i32
  }
  func.func @transform_6(%arg0: i32) -> (i32, i32) {
    %c0_i32 = arith.constant 0 : i32
    %c0_i32_0 = arith.constant 0 : i32
    %c0_i32_1 = arith.constant 0 : i32
    return %c0_i32, %c0_i32_0 : i32, i32
  }
  func.func @transform_7(%arg0: i32) -> (i32, i32, i32) {
    %c0_i32 = arith.constant 0 : i32
    %c0_i32_0 = arith.constant 0 : i32
    %c0_i32_1 = arith.constant 0 : i32
    return %arg0, %c0_i32, %c0_i32_0 : i32, i32, i32
  }
}

</mosaic_0001>

<llo_original>
// kernel: _forward_impl.1
$region0: #{_forward_impl.1}
  #allocation0 [shape = 'u32[]', space=smem, size = 0x4, offset = 0x4, fixed_abs, tag = 'smem constant byte address 0x4 - core index']
  #allocation1 [shape = 'u32[144,128]{1,0:T(1,128)}', space=vmem, size = 0x12000, scoped, tag = 'internal scratch']
  #allocation2 [shape = 'bf16[16,512]{1,0:T(16,128)(2,1)}', space=vmem, size = 0x4000, scoped, tag = 'scratch operand']
  %s0 = inlined_call_operand.vmem [shape: f32[2,16,256], index: 0, kind: input, shape index: {}]
  %s1 = inlined_call_operand.vmem [shape: bf16[3,32,48], index: 1, kind: input, shape index: {}]
  %s2 = inlined_call_operand.vmem [shape: f32[32,32], index: 2, kind: input, shape index: {}]
  %s3 = inlined_call_operand.vmem [shape: f32[32,1], index: 3, kind: input, shape index: {}]
  %s4 = inlined_call_operand.vmem [shape: f32[32,1], index: 4, kind: input, shape index: {}]
  %s5 = inlined_call_operand.vmem [shape: bf16[16,32], index: 5, kind: input, shape index: {}]
  %s6 = inlined_call_operand.vmem [shape: f32[16,1], index: 6, kind: input, shape index: {}]
  %s7 = inlined_call_operand.vmem [shape: f32[2,16,256], index: 7, kind: output, shape index: {}]
  %s8 = sld [smem:[#allocation0]]
  $region61: #{_forward_impl.1} parent=0
    _
  %s10 = ssub.s32 1, %s8
  %s11 = scalar_select 0, %s10, %s8
  loop: start=0, step=1, limit=4
  $region2: #{_forward_impl.1} parent=0 // loop_pre_header
    _
  $region3: #{_forward_impl.1} parent=0 // loop_header
    %s13 = sphi 0, %s17
    %p14 = scmp.ge.s32.totalorder %s13, 4
    %s23 = sphi 0, %s25
    %s26 = sphi 0, %s23
    %s27 = sphi 0, %s26
    %s43 = sphi 0, %s27
    %s47 = sphi 0, %s47
    %s49 = sphi 0, %s47
    %s50 = sphi 0, %s49
    %s64 = sphi 0, %s50
    %s68 = sphi 0, %s68
    %s70 = sphi 0, %s68
    %s71 = sphi 0, %s70
    %s85 = sphi 0, %s71
    %s89 = sphi 0, %s89
    %s91 = sphi 0, %s89
    %s92 = sphi 0, %s91
    %s106 = sphi 0, %s92
    %s110 = sphi 0, %s110
    %s112 = sphi 0, %s110
    %s113 = sphi 0, %s112
    %s127 = sphi 0, %s113
    %s131 = sphi 0, %s131
    %s133 = sphi 0, %s131
    %s134 = sphi 0, %s133
    %s148 = sphi 0, %s134
    %s152 = sphi 0, %s152
    %s154 = sphi 0, %s152
    %s155 = sphi 0, %s154
    %s169 = sphi 0, %s155
    %s175 = sphi 0, %s177
    %s178 = sphi 0, %s175
    %s179 = sphi 0, %s178
    %s195 = sphi 0, %s179
  $region4: #{_forward_impl.1} parent=0 // loop_header_branch
    %16 = sbr.rel (%p14) target = $region8
  $region5: #{_forward_impl.1} parent=0 // loop_body
    %s18 = ssub.s32 %s13, 1
    %s19 = ssub.s32 %s13, 2
    %s20 = sadd.s32 %s13, 1
    %s21 = ssub.s32 %s13, %s20
    %p22 = scmp.eq.s32.totalorder %s21, 0
    %s24 = sadd.s32 %s23, 1
    %s25 = scalar_select %p22, %s23, %s24
    %p28 = pneg %p22
    %p29 = scmp.eq.s32.totalorder %s13, 1
    %p30 = por %p28, %p29
    %p31 = scmp.ne.s32.totalorder %s23, %s26
    %p32 = scmp.eq.s32.totalorder %s13, 0
    %p33 = por %p31, %p32
    %p34 = scmp.ne.s32.totalorder %s23, %s26
    %p35 = scmp.eq.s32.totalorder %s18, 1
    %p36 = por %p34, %p35
    %p37 = scmp.ne.s32.totalorder %s26, %s27
    %p38 = scmp.eq.s32.totalorder %s18, 0
    %p39 = por %p37, %p38
    %p40 = scmp.ne.s32.totalorder %s26, %s27
    %p41 = scmp.eq.s32.totalorder %s19, 1
    %p42 = por %p40, %p41
    %p44 = scmp.ne.s32.totalorder %s27, %s43
    %p45 = scmp.eq.s32.totalorder %s19, 0
    %p46 = por %p44, %p45
    %s48 = sadd.s32 %s47, 1
    %p51 = scmp.eq.s32.totalorder %s13, 1
    %p52 = scmp.ne.s32.totalorder %s47, %s49
    %p53 = scmp.eq.s32.totalorder %s13, 0
    %p54 = por %p52, %p53
    %p55 = scmp.ne.s32.totalorder %s47, %s49
    %p56 = scmp.eq.s32.totalorder %s18, 1
    %p57 = por %p55, %p56
    %p58 = scmp.ne.s32.totalorder %s49, %s50
    %p59 = scmp.eq.s32.totalorder %s18, 0
    %p60 = por %p58, %p59
    %p61 = scmp.ne.s32.totalorder %s49, %s50
    %p62 = scmp.eq.s32.totalorder %s19, 1
    %p63 = por %p61, %p62
    %p65 = scmp.ne.s32.totalorder %s50, %s64
    %p66 = scmp.eq.s32.totalorder %s19, 0
    %p67 = por %p65, %p66
    %s69 = sadd.s32 %s68, 1
    %p72 = scmp.eq.s32.totalorder %s13, 1
    %p73 = scmp.ne.s32.totalorder %s68, %s70
    %p74 = scmp.eq.s32.totalorder %s13, 0
    %p75 = por %p73, %p74
    %p76 = scmp.ne.s32.totalorder %s68, %s70
    %p77 = scmp.eq.s32.totalorder %s18, 1
    %p78 = por %p76, %p77
    %p79 = scmp.ne.s32.totalorder %s70, %s71
    %p80 = scmp.eq.s32.totalorder %s18, 0
    %p81 = por %p79, %p80
    %p82 = scmp.ne.s32.totalorder %s70, %s71
    %p83 = scmp.eq.s32.totalorder %s19, 1
    %p84 = por %p82, %p83
    %p86 = scmp.ne.s32.totalorder %s71, %s85
    %p87 = scmp.eq.s32.totalorder %s19, 0
    %p88 = por %p86, %p87
    %s90 = sadd.s32 %s89, 1
    %p93 = scmp.eq.s32.totalorder %s13, 1
    %p94 = scmp.ne.s32.totalorder %s89, %s91
    %p95 = scmp.eq.s32.totalorder %s13, 0
    %p96 = por %p94, %p95
    %p97 = scmp.ne.s32.totalorder %s89, %s91
    %p98 = scmp.eq.s32.totalorder %s18, 1
    %p99 = por %p97, %p98
    %p100 = scmp.ne.s32.totalorder %s91, %s92
    %p101 = scmp.eq.s32.totalorder %s18, 0
    %p102 = por %p100, %p101
    %p103 = scmp.ne.s32.totalorder %s91, %s92
    %p104 = scmp.eq.s32.totalorder %s19, 1
    %p105 = por %p103, %p104
    %p107 = scmp.ne.s32.totalorder %s92, %s106
    %p108 = scmp.eq.s32.totalorder %s19, 0
    %p109 = por %p107, %p108
    %s111 = sadd.s32 %s110, 1
    %p114 = scmp.eq.s32.totalorder %s13, 1
    %p115 = scmp.ne.s32.totalorder %s110, %s112
    %p116 = scmp.eq.s32.totalorder %s13, 0
    %p117 = por %p115, %p116
    %p118 = scmp.ne.s32.totalorder %s110, %s112
    %p119 = scmp.eq.s32.totalorder %s18, 1
    %p120 = por %p118, %p119
    %p121 = scmp.ne.s32.totalorder %s112, %s113
    %p122 = scmp.eq.s32.totalorder %s18, 0
    %p123 = por %p121, %p122
    %p124 = scmp.ne.s32.totalorder %s112, %s113
    %p125 = scmp.eq.s32.totalorder %s19, 1
    %p126 = por %p124, %p125
    %p128 = scmp.ne.s32.totalorder %s113, %s127
    %p129 = scmp.eq.s32.totalorder %s19, 0
    %p130 = por %p128, %p129
    %s132 = sadd.s32 %s131, 1
    %p135 = scmp.eq.s32.totalorder %s13, 1
    %p136 = scmp.ne.s32.totalorder %s131, %s133
    %p137 = scmp.eq.s32.totalorder %s13, 0
    %p138 = por %p136, %p137
    %p139 = scmp.ne.s32.totalorder %s131, %s133
    %p140 = scmp.eq.s32.totalorder %s18, 1
    %p141 = por %p139, %p140
    %p142 = scmp.ne.s32.totalorder %s133, %s134
    %p143 = scmp.eq.s32.totalorder %s18, 0
    %p144 = por %p142, %p143
    %p145 = scmp.ne.s32.totalorder %s133, %s134
    %p146 = scmp.eq.s32.totalorder %s19, 1
    %p147 = por %p145, %p146
    %p149 = scmp.ne.s32.totalorder %s134, %s148
    %p150 = scmp.eq.s32.totalorder %s19, 0
    %p151 = por %p149, %p150
    %s153 = sadd.s32 %s152, 1
    %p156 = scmp.eq.s32.totalorder %s13, 1
    %p157 = scmp.ne.s32.totalorder %s152, %s154
    %p158 = scmp.eq.s32.totalorder %s13, 0
    %p159 = por %p157, %p158
    %p160 = scmp.ne.s32.totalorder %s152, %s154
    %p161 = scmp.eq.s32.totalorder %s18, 1
    %p162 = por %p160, %p161
    %p163 = scmp.ne.s32.totalorder %s154, %s155
    %p164 = scmp.eq.s32.totalorder %s18, 0
    %p165 = por %p163, %p164
    %p166 = scmp.ne.s32.totalorder %s154, %s155
    %p167 = scmp.eq.s32.totalorder %s19, 1
    %p168 = por %p166, %p167
    %p170 = scmp.ne.s32.totalorder %s155, %s169
    %p171 = scmp.eq.s32.totalorder %s19, 0
    %p172 = por %p170, %p171
    %s173 = ssub.s32 %s13, %s20
    %p174 = scmp.eq.s32.totalorder %s173, 0
    %s176 = sadd.s32 %s175, 1
    %s177 = scalar_select %p174, %s175, %s176
    %p180 = pneg %p174
    %p181 = scmp.eq.s32.totalorder %s13, 1
    %p182 = por %p180, %p181
    %p183 = scmp.ne.s32.totalorder %s175, %s178
    %p184 = scmp.eq.s32.totalorder %s13, 0
    %p185 = por %p183, %p184
    %p186 = scmp.ne.s32.totalorder %s175, %s178
    %p187 = scmp.eq.s32.totalorder %s18, 1
    %p188 = por %p186, %p187
    %p189 = scmp.ne.s32.totalorder %s178, %s179
    %p190 = scmp.eq.s32.totalorder %s18, 0
    %p191 = por %p189, %p190
    %p192 = scmp.ne.s32.totalorder %s178, %s179
    %p193 = scmp.eq.s32.totalorder %s19, 1
    %p194 = por %p192, %p193
    %p196 = scmp.ne.s32.totalorder %s179, %s195
    %p197 = scmp.eq.s32.totalorder %s19, 0
    %p198 = por %p196, %p197
    %p199 = scmp.le.s32.totalorder 1, %s13
    %p200 = scmp.lt.s32.totalorder %s13, 3
    %p201 = pnand %p199, %p200
    %p202 = pneg %p201
    // Predicated region
    $region9: #{_forward_impl.1} parent=5 // pred_check
      _
    $region10: #{_forward_impl.1} parent=5 // pred_check_branch
      %204 = sbr.rel (%p201) target = $region12
    $region11: #{_forward_impl.1} parent=5 // pred_region
      %s205 = ssub.s32 %s13, 1
      // Predicated region
      $region13: #{_forward_impl.1} parent=11 // pred_check
        %p206 = pneg %p60
      $region14: #{_forward_impl.1} parent=11 // pred_check_branch
        %208 = sbr.rel (%p206) target = $region16
      $region15: #{_forward_impl.1} parent=11 // pred_region
        _
      $region16: #{_forward_impl.1} parent=11 // pred_fallthru
        _
      // Predicated region
      $region17: #{_forward_impl.1} parent=11 // pred_check
        %p209 = pneg %p81
      $region18: #{_forward_impl.1} parent=11 // pred_check_branch
        %211 = sbr.rel (%p209) target = $region20
      $region19: #{_forward_impl.1} parent=11 // pred_region
        _
      $region20: #{_forward_impl.1} parent=11 // pred_fallthru
        _
      // Predicated region
      $region21: #{_forward_impl.1} parent=11 // pred_check
        %p212 = pneg %p102
      $region22: #{_forward_impl.1} parent=11 // pred_check_branch
        %214 = sbr.rel (%p212) target = $region24
      $region23: #{_forward_impl.1} parent=11 // pred_region
        _
      $region24: #{_forward_impl.1} parent=11 // pred_fallthru
        _
      // Predicated region
      $region25: #{_forward_impl.1} parent=11 // pred_check
        %p215 = pneg %p123
      $region26: #{_forward_impl.1} parent=11 // pred_check_branch
        %217 = sbr.rel (%p215) target = $region28
      $region27: #{_forward_impl.1} parent=11 // pred_region
        _
      $region28: #{_forward_impl.1} parent=11 // pred_fallthru
        _
      // Predicated region
      $region29: #{_forward_impl.1} parent=11 // pred_check
        %p218 = pneg %p144
      $region30: #{_forward_impl.1} parent=11 // pred_check_branch
        %220 = sbr.rel (%p218) target = $region32
      $region31: #{_forward_impl.1} parent=11 // pred_region
        _
      $region32: #{_forward_impl.1} parent=11 // pred_fallthru
        _
      // Predicated region
      $region33: #{_forward_impl.1} parent=11 // pred_check
        %p221 = pneg %p165
      $region34: #{_forward_impl.1} parent=11 // pred_check_branch
        %223 = sbr.rel (%p221) target = $region36
      $region35: #{_forward_impl.1} parent=11 // pred_region
        _
      $region36: #{_forward_impl.1} parent=11 // pred_fallthru
        _
    $region12: #{_forward_impl.1} parent=5 // pred_fallthru
      _
    %p224 = scmp.lt.s32.totalorder %s13, 2
    // Predicated region
    $region37: #{_forward_impl.1} parent=5 // pred_check
      %p225 = pneg %p224
    $region38: #{_forward_impl.1} parent=5 // pred_check_branch
      %227 = sbr.rel (%p225) target = $region40
    $region39: #{_forward_impl.1} parent=5 // pred_region
      // Predicated region
      $region41: #{_forward_impl.1} parent=39 // pred_check
        %p228 = pneg %p33
      $region42: #{_forward_impl.1} parent=39 // pred_check_branch
        %230 = sbr.rel (%p228) target = $region44
      $region43: #{_forward_impl.1} parent=39 // pred_region
        %p231 = scmp.lt.s32.totalorder %s13, 1
        %s232 = scalar_select %p231, %s13, 1
        %s233 = smul.addr %s232, 4
        %s234 = smul.addr %s233, 8
        %s235 = scalar_lea.vmem %s0, %s234
      $region44: #{_forward_impl.1} parent=39 // pred_fallthru
        _
    $region40: #{_forward_impl.1} parent=5 // pred_fallthru
      _
    %p236 = scmp.le.s32.totalorder 1, %s13
    %p237 = scmp.lt.s32.totalorder %s13, 3
    %p238 = pnand %p236, %p237
    %p239 = pneg %p238
    // Predicated region
    $region45: #{_forward_impl.1} parent=5 // pred_check
      _
    $region46: #{_forward_impl.1} parent=5 // pred_check_branch
      %241 = sbr.rel (%p238) target = $region48
    $region47: #{_forward_impl.1} parent=5 // pred_region
      %s242 = ssub.s32 %s13, 1
      %p243 = scmp.lt.s32.totalorder %s18, 1
      %s244 = scalar_select %p243, %s18, 1
      %s245 = smul.addr %s244, 4
      %s246 = smul.addr %s245, 8
      %s247 = scalar_lea.vmem %s0, %s246
      %p248 = pneg %p39
      %p249 = pneg %p36
      %p250 = pneg %p60
      %p251 = pneg %p57
      %p252 = pneg %p81
      %p253 = pneg %p78
      %p254 = pneg %p102
      %p255 = pneg %p99
      %p256 = pneg %p123
      %p257 = pneg %p120
      %p258 = pneg %p144
      %p259 = pneg %p141
      %p260 = pneg %p165
      %p261 = pneg %p162
      %p262 = pneg %p191
      %p263 = pneg %p188
      %p264 = scmp.lt.s32.totalorder %s18, 1
      %s265 = scalar_select %p264, %s18, 1
      %s266 = smul.addr %s265, 4
      %s267 = smul.addr %s266, 8
      %s268 = scalar_lea.vmem %s7, %s267
      %p269 = scmp.lt.s32.totalorder %s18, 1
      %s270 = scalar_select %p269, %s18, 1
      %s271 = smul.addr %s270, 4
      %s272 = smul.addr %s271, 8
      %s273 = scalar_lea.vmem %s0, %s272
      %p274 = scmp.lt.s32.totalorder %s18, 1
      %s275 = scalar_select %p274, %s18, 1
      %s276 = smul.addr %s275, 4
      %s277 = smul.addr %s276, 8
      %s278 = scalar_lea.vmem %s7, %s277
      %280 = vst [vmem:[#allocation2] sm:$0xff] 0
      %281 = vst [vmem:[#allocation2 + $0x18] sm:$0xff] 0
      %v282 = vld [vmem:[%s273] sm:$0xff]
      %v283 = vld [vmem:[%s273 + $0x8] sm:$0xff]
      %v284 = vld [vmem:[%s273 + $0x10] sm:$0xff]
      %v285 = vld [vmem:[%s273 + $0x18] sm:$0xff]
      %v286 = vpack.c.bf16 %v284, %v282
      %v287 = vpack.c.bf16 %v285, %v283
      %288 = vst [vmem:[#allocation2 + $0x8] sm:$0xff] %v286
      %289 = vst [vmem:[#allocation2 + $0x10] sm:$0xff] %v287
      %v290 = vld [vmem:[#allocation2] sm:$0xff]
      %v291 = vld [vmem:[#allocation2 + $0x8] sm:$0xff]
      %v292 = vld [vmem:[#allocation2 + $0x10] sm:$0xff]
      %v293 = vld [vmem:[#allocation2 + $0x18] sm:$0xff]
      %v294 = vlaneseq
      %v295 = vand.u32 %v294, 127
      %v296 = vadd.s32 %v295, 128
      %v297 = vadd.s32 %v295, 256
      %vm298 = vcmp.lt.s32.totalorder %v295, 0
      %v299 = vsub.s32 0, %v295
      %v300 = vsel %vm298, %v299, %v295
      %v301 = vshrl.u32 %v300, 4
      %v302 = vand.u32 %v300, 15
      %v303 = vsub.s32 0, %v302
      %v304 = vsel %vm298, %v303, %v302
      %vm305 = vcmp.lt.s32.totalorder %v296, 0
      %v306 = vsub.s32 0, %v296
      %v307 = vsel %vm305, %v306, %v296
      %v308 = vshrl.u32 %v307, 4
      %v309 = vand.u32 %v307, 15
      %v310 = vsub.s32 0, %v309
      %v311 = vsel %vm305, %v310, %v309
      %vm312 = vcmp.lt.s32.totalorder %v297, 0
      %v313 = vsub.s32 0, %v297
      %v314 = vsel %vm312, %v313, %v297
      %v315 = vshrl.u32 %v314, 4
      %v316 = vand.u32 %v314, 15
      %v317 = vsub.s32 0, %v316
      %v318 = vsel %vm312, %v317, %v316
      %vm319 = vcmp.ne.s32.totalorder %v304, 0
      %vm320 = vcmp.ne.s32.totalorder %v311, 0
      %vm321 = vcmp.ne.s32.totalorder %v318, 0
      %vm322 = vcmp.lt.s32.totalorder %v304, 0
      %vm323 = vcmp.lt.s32.totalorder %v311, 0
      %vm324 = vcmp.lt.s32.totalorder %v318, 0
      %vm325 = vmand %vm322, %vm319
      %vm326 = vmand %vm323, %vm320
      %vm327 = vmand %vm324, %vm321
      %v328 = vadd.s32 %v304, 16
      %v329 = vadd.s32 %v311, 16
      %v330 = vadd.s32 %v318, 16
      %v331 = vsel %vm325, %v328, %v304
      %v332 = vsel %vm326, %v329, %v311
      %v333 = vsel %vm327, %v330, %v318
      %vm334 = vcmp.ne.s32.totalorder %v331, 0
      %vm335 = vcmp.ne.s32.totalorder %v332, 0
      %vm336 = vcmp.ne.s32.totalorder %v333, 0
      %v337 = vsel %vm334, 1, 0
      %v338 = vsel %vm335, 1, 0
      %v339 = vsel %vm336, 1, 0
      %v340 = vcvt.s32.f32 %v337
      %v341 = vcvt.s32.f32 %v338
      %v342 = vcvt.s32.f32 %v339
      %v343 = vpack.c.bf16 %v340, %v340
      %v344 = vpack.c.bf16 %v341, %v341
      %v345 = vpack.c.bf16 %v342, %v342
      %vm346 = vcmp.ne.s32.totalorder %v331, 15
      %vm347 = vcmp.ne.s32.totalorder %v332, 15
      %vm348 = vcmp.ne.s32.totalorder %v333, 15
      %v349 = vsel %vm346, 1, 0
      %v350 = vsel %vm347, 1, 0
      %v351 = vsel %vm348, 1, 0
      %v352 = vcvt.s32.f32 %v349
      %v353 = vcvt.s32.f32 %v350
      %v354 = vcvt.s32.f32 %v351
      %v355 = vpack.c.bf16 %v352, %v352
      %v356 = vpack.c.bf16 %v353, %v353
      %v357 = vpack.c.bf16 %v354, %v354
      %361 = vrot.lane.b32.xlu0 %v343, 111
      %v362 = vpop.permute.xlu0 %361
      %363 = vrot.lane.b32.xlu0 %v344, 111
      %v364 = vpop.permute.xlu0 %363
      %365 = vrot.lane.b32.xlu0 %v345, 111
      %v366 = vpop.permute.xlu0 %365
      %vm367 = vcmask 908288
      %v368 = vsel %vm367, %v362, %v364
      %v369 = vsel %vm367, %v364, %v366
      %v374 = vmul.bf16 %v290, %v362
      %v375 = vmul.bf16 %v291, %v368
      %v376 = vmul.bf16 %v292, %v369
      %v377 = vmul.bf16 %v293, %v366
      %381 = vrot.lane.b32.xlu0 %v355, 113
      %v382 = vpop.permute.xlu0 %381
      %383 = vrot.lane.b32.xlu0 %v356, 113
      %v384 = vpop.permute.xlu0 %383
      %385 = vrot.lane.b32.xlu0 %v357, 113
      %v386 = vpop.permute.xlu0 %385
      %vm387 = vcmask 924672
      %v388 = vsel %vm387, %v382, %v384
      %v389 = vsel %vm387, %v384, %v386
      %v394 = vmul.bf16 %v290, %v382
      %v395 = vmul.bf16 %v291, %v388
      %v396 = vmul.bf16 %v292, %v389
      %v397 = vmul.bf16 %v293, %v386
      %402 = vrot.lane.b32.xlu0 %v290, 127
      %v403 = vpop.permute.xlu0 %402
      %404 = vrot.lane.b32.xlu0 %v291, 127
      %v405 = vpop.permute.xlu0 %404
      %406 = vrot.lane.b32.xlu0 %v292, 127
      %v407 = vpop.permute.xlu0 %406
      %408 = vrot.lane.b32.xlu0 %v293, 127
      %v409 = vpop.permute.xlu0 %408
      %vm410 = vcmask 1039360
      %v411 = vsel %vm410, %v403, %v405
      %v412 = vsel %vm410, %v405, %v407
      %v413 = vsel %vm410, %v407, %v409
      %418 = vrot.lane.b32.xlu0 %v394, 126
      %v419 = vpop.permute.xlu0 %418
      %420 = vrot.lane.b32.xlu0 %v395, 126
      %v421 = vpop.permute.xlu0 %420
      %422 = vrot.lane.b32.xlu0 %v396, 126
      %v423 = vpop.permute.xlu0 %422
      %424 = vrot.lane.b32.xlu0 %v397, 126
      %v425 = vpop.permute.xlu0 %424
      %vm426 = vcmask 1031168
      %v427 = vsel %vm426, %v419, %v421
      %v428 = vsel %vm426, %v421, %v423
      %v429 = vsel %vm426, %v423, %v425
      %v430 = vld [vmem:[%s1] sm:$0xf]
      %v431 = vld [vmem:[%s1 + $0x4] sm:$0xf]
      %v432 = vld [vmem:[%s1 + $0x8] sm:$0xf]
      %v433 = vld [vmem:[%s1 + $0xc] sm:$0xf]
      %s434 = scalar_lea.vmem %s1, 16
      %v435 = vld [vmem:[%s434] sm:$0xf]
      %v436 = vld [vmem:[%s434 + $0x4] sm:$0xf]
      %v437 = vld [vmem:[%s434 + $0x8] sm:$0xf]
      %v438 = vld [vmem:[%s434 + $0xc] sm:$0xf]
      %v443 = vunpack.c.l.b16 %v435
      %v444 = vunpack.c.l.b16 %v436
      %v445 = vunpack.c.l.b16 %v437
      %v446 = vunpack.c.l.b16 %v438
      %v447 = vpack.c.b16 %v444, %v443
      %v448 = vpack.c.b16 %v446, %v445
      %452 = vrot.lane.b32.xlu0 %v374, 1
      %v453 = vpop.permute.xlu0 %452
      %454 = vrot.lane.b32.xlu0 %v375, 1
      %v455 = vpop.permute.xlu0 %454
      %456 = vrot.lane.b32.xlu0 %v376, 1
      %v457 = vpop.permute.xlu0 %456
      %458 = vrot.lane.b32.xlu0 %v411, 1
      %v459 = vpop.permute.xlu0 %458
      %460 = vrot.lane.b32.xlu0 %v412, 1
      %v461 = vpop.permute.xlu0 %460
      %462 = vrot.lane.b32.xlu0 %v413, 1
      %v463 = vpop.permute.xlu0 %462
      %464 = vrot.lane.b32.xlu0 %v427, 1
      %v465 = vpop.permute.xlu0 %464
      %466 = vrot.lane.b32.xlu0 %v428, 1
      %v467 = vpop.permute.xlu0 %466
      %468 = vrot.lane.b32.xlu0 %v429, 1
      %v469 = vpop.permute.xlu0 %468
      %vm470 = vcmask 7168
      %v471 = vsel %vm470, %v453, %v455
      %v472 = vsel %vm470, %v455, %v457
      %v473 = vsel %vm470, %v459, %v461
      %v474 = vsel %vm470, %v461, %v463
      %v475 = vsel %vm470, %v465, %v467
      %v476 = vsel %vm470, %v467, %v469
      %vm483 = vcmask 392192
      %v485 = vsel %vm483, %v447, 0
      %v488 = vsel %vm483, %v448, 0
      %490 = vmatprep.subr.bf16.mxu0 %v472
      %491 = vmatpush1.bf16.msra.mxu0 %v471
      %492 = vmatprep.subr.bf16.mxu0 %v474
      %493 = vmatpush1.bf16.msra.mxu0 %v473
      %494 = vmatprep.subr.bf16.mxu0 %v476
      %495 = vmatpush1.bf16.msra.mxu0 %v475
      %496 = vmatprep.subr.bf16.mxu0 0
      %497 = vmatpush1.bf16.msra.mxu0 0
      %498 = vmatprep.subr.bf16.mxu0 0
      %499 = vmatpush1.bf16.msra.mxu0 0
      %500 = vmatprep.subr.bf16.mxu0 0
      %501 = vmatpush1.bf16.msra.mxu0 0
      %502 = vmatprep.subr.bf16.mxu0 0
      %503 = vmatpush1.bf16.msra.mxu0 0
      %504 = vmatprep.subr.bf16.mxu0 0
      %505 = vmatpush1.bf16.msra.mxu0 0
      %506 = vmatprep.subr.bf16.mxu0 0
      %507 = vmatpush1.bf16.msra.mxu0 0
      %508 = vmatprep.subr.bf16.mxu0 0
      %509 = vmatpush1.bf16.msra.mxu0 0
      %510 = vmatprep.subr.bf16.mxu0 0
      %511 = vmatpush1.bf16.msra.mxu0 0
      %512 = vmatprep.subr.bf16.mxu0 0
      %513 = vmatpush1.bf16.msra.mxu0 0
      %514 = vmatprep.subr.bf16.mxu0 0
      %515 = vmatpush1.bf16.msra.mxu0 0
      %516 = vmatprep.subr.bf16.mxu0 0
      %517 = vmatpush1.bf16.msra.mxu0 0
      %518 = vmatprep.subr.bf16.mxu0 0
      %519 = vmatpush1.bf16.msra.mxu0 0
      %520 = vmatprep.subr.bf16.mxu0 0
      %521 = vmatpush1.bf16.msra.mxu0 0
      %522 = vmatprep.mubr.bf16.mxu0 0
      %523 = vmatmul.mubr.bf16.gmra.mrb[0].mxu0 %v485
      %v524 = vpop.f32.mrb[0].mxu0
      %v525 = vadd.f32 0.0, %v524
      %v526 = vpop.f32.mrb[0].mxu0
      %v527 = vadd.f32 0.0, %v526
      %v528 = vpop.f32.mrb[0].mxu0
      %v529 = vadd.f32 0.0, %v528
      %v530 = vpop.f32.mrb[0].mxu0
      %v531 = vadd.f32 0.0, %v530
      %532 = vmatprep.mubr.bf16.mxu0 0
      %533 = vmatmul.mubr.bf16.gmra.mrb[0].mxu0 %v488
      %v534 = vpop.f32.mrb[0].mxu0
      %v535 = vadd.f32 0.0, %v534
      %v536 = vpop.f32.mrb[0].mxu0
      %v537 = vadd.f32 0.0, %v536
      %v538 = vpop.f32.mrb[0].mxu0
      %v539 = vadd.f32 0.0, %v538
      %v540 = vpop.f32.mrb[0].mxu0
      %v541 = vadd.f32 0.0, %v540
      %542 = vdwg.mxu0
      %v547 = vunpack.c.l.b16 %v430
      %v548 = vunpack.c.l.b16 %v431
      %v549 = vunpack.c.l.b16 %v432
      %v550 = vunpack.c.l.b16 %v433
      %v551 = vpack.c.b16 %v548, %v547
      %v552 = vpack.c.b16 %v550, %v549
      %553 = vrot.lane.b32.xlu0 %v374, 17
      %v554 = vpop.permute.xlu0 %553
      %555 = vrot.lane.b32.xlu0 %v375, 17
      %v556 = vpop.permute.xlu0 %555
      %557 = vrot.lane.b32.xlu0 %v376, 17
      %v558 = vpop.permute.xlu0 %557
      %559 = vrot.lane.b32.xlu0 %v411, 17
      %v560 = vpop.permute.xlu0 %559
      %561 = vrot.lane.b32.xlu0 %v412, 17
      %v562 = vpop.permute.xlu0 %561
      %563 = vrot.lane.b32.xlu0 %v413, 17
      %v564 = vpop.permute.xlu0 %563
      %565 = vrot.lane.b32.xlu0 %v427, 17
      %v566 = vpop.permute.xlu0 %565
      %567 = vrot.lane.b32.xlu0 %v428, 17
      %v568 = vpop.permute.xlu0 %567
      %569 = vrot.lane.b32.xlu0 %v429, 17
      %v570 = vpop.permute.xlu0 %569
      %vm571 = vcmask 138240
      %v572 = vsel %vm571, %v554, %v556
      %v573 = vsel %vm571, %v556, %v558
      %v574 = vsel %vm571, %v560, %v562
      %v575 = vsel %vm571, %v562, %v564
      %v576 = vsel %vm571, %v566, %v568
      %v577 = vsel %vm571, %v568, %v570
      %v585 = vsel %vm483, %v551, 0
      %v588 = vsel %vm483, %v552, 0
      %590 = vmatprep.subr.bf16.mxu0 %v573
      %591 = vmatpush1.bf16.msra.mxu0 %v572
      %592 = vmatprep.subr.bf16.mxu0 %v575
      %593 = vmatpush1.bf16.msra.mxu0 %v574
      %594 = vmatprep.subr.bf16.mxu0 %v577
      %595 = vmatpush1.bf16.msra.mxu0 %v576
      %596 = vmatprep.subr.bf16.mxu0 0
      %597 = vmatpush1.bf16.msra.mxu0 0
      %598 = vmatprep.subr.bf16.mxu0 0
      %599 = vmatpush1.bf16.msra.mxu0 0
      %600 = vmatprep.subr.bf16.mxu0 0
      %601 = vmatpush1.bf16.msra.mxu0 0
      %602 = vmatprep.subr.bf16.mxu0 0
      %603 = vmatpush1.bf16.msra.mxu0 0
      %604 = vmatprep.subr.bf16.mxu0 0
      %605 = vmatpush1.bf16.msra.mxu0 0
      %606 = vmatprep.subr.bf16.mxu0 0
      %607 = vmatpush1.bf16.msra.mxu0 0
      %608 = vmatprep.subr.bf16.mxu0 0
      %609 = vmatpush1.bf16.msra.mxu0 0
      %610 = vmatprep.subr.bf16.mxu0 0
      %611 = vmatpush1.bf16.msra.mxu0 0
      %612 = vmatprep.subr.bf16.mxu0 0
      %613 = vmatpush1.bf16.msra.mxu0 0
      %614 = vmatprep.subr.bf16.mxu0 0
      %615 = vmatpush1.bf16.msra.mxu0 0
      %616 = vmatprep.subr.bf16.mxu0 0
      %617 = vmatpush1.bf16.msra.mxu0 0
      %618 = vmatprep.subr.bf16.mxu0 0
      %619 = vmatpush1.bf16.msra.mxu0 0
      %620 = vmatprep.subr.bf16.mxu0 0
      %621 = vmatpush1.bf16.msra.mxu0 0
      %622 = vmatprep.mubr.bf16.mxu0 0
      %623 = vmatmul.mubr.bf16.gmra.mrb[0].mxu0 %v585
      %v624 = vpop.f32.mrb[0].mxu0
      %v625 = vadd.f32 %v525, %v624
      %v626 = vpop.f32.mrb[0].mxu0
      %v627 = vadd.f32 %v527, %v626
      %v628 = vpop.f32.mrb[0].mxu0
      %v629 = vadd.f32 %v529, %v628
      %v630 = vpop.f32.mrb[0].mxu0
      %v631 = vadd.f32 %v531, %v630
      %632 = vmatprep.mubr.bf16.mxu0 0
      %633 = vmatmul.mubr.bf16.gmra.mrb[0].mxu0 %v588
      %v634 = vpop.f32.mrb[0].mxu0
      %v635 = vadd.f32 %v535, %v634
      %v636 = vpop.f32.mrb[0].mxu0
      %v637 = vadd.f32 %v537, %v636
      %v638 = vpop.f32.mrb[0].mxu0
      %v639 = vadd.f32 %v539, %v638
      %v640 = vpop.f32.mrb[0].mxu0
      %v641 = vadd.f32 %v541, %v640
      %642 = vdwg.mxu0
      %s643 = scalar_lea.vmem %s1, 32
      %v644 = vld [vmem:[%s643] sm:$0xf]
      %v645 = vld [vmem:[%s643 + $0x4] sm:$0xf]
      %v646 = vld [vmem:[%s643 + $0x8] sm:$0xf]
      %v647 = vld [vmem:[%s643 + $0xc] sm:$0xf]
      %v652 = vunpack.c.l.b16 %v644
      %v653 = vunpack.c.l.b16 %v645
      %v654 = vunpack.c.l.b16 %v646
      %v655 = vunpack.c.l.b16 %v647
      %v656 = vpack.c.b16 %v653, %v652
      %v657 = vpack.c.b16 %v655, %v654
      %659 = vrot.lane.b32.xlu0 %v375, 113
      %v660 = vpop.permute.xlu0 %659
      %661 = vrot.lane.b32.xlu0 %v376, 113
      %v662 = vpop.permute.xlu0 %661
      %663 = vrot.lane.b32.xlu0 %v377, 113
      %v664 = vpop.permute.xlu0 %663
      %665 = vrot.lane.b32.xlu0 %v412, 113
      %v666 = vpop.permute.xlu0 %665
      %667 = vrot.lane.b32.xlu0 %v413, 113
      %v668 = vpop.permute.xlu0 %667
      %669 = vrot.lane.b32.xlu0 %v409, 113
      %v670 = vpop.permute.xlu0 %669
      %671 = vrot.lane.b32.xlu0 %v428, 113
      %v672 = vpop.permute.xlu0 %671
      %673 = vrot.lane.b32.xlu0 %v429, 113
      %v674 = vpop.permute.xlu0 %673
      %675 = vrot.lane.b32.xlu0 %v425, 113
      %v676 = vpop.permute.xlu0 %675
      %v677 = vsel %vm387, %v660, %v662
      %v678 = vsel %vm387, %v662, %v664
      %v679 = vsel %vm387, %v666, %v668
      %v680 = vsel %vm387, %v668, %v670
      %v681 = vsel %vm387, %v672, %v674
      %v682 = vsel %vm387, %v674, %v676
      %v690 = vsel %vm483, %v656, 0
      %v693 = vsel %vm483, %v657, 0
      %695 = vmatprep.subr.bf16.mxu0 %v678
      %696 = vmatpush1.bf16.msra.mxu0 %v677
      %697 = vmatprep.subr.bf16.mxu0 %v680
      %698 = vmatpush1.bf16.msra.mxu0 %v679
      %699 = vmatprep.subr.bf16.mxu0 %v682
      %700 = vmatpush1.bf16.msra.mxu0 %v681
      %701 = vmatprep.subr.bf16.mxu0 0
      %702 = vmatpush1.bf16.msra.mxu0 0
      %703 = vmatprep.subr.bf16.mxu0 0
      %704 = vmatpush1.bf16.msra.mxu0 0
      %705 = vmatprep.subr.bf16.mxu0 0
      %706 = vmatpush1.bf16.msra.mxu0 0
      %707 = vmatprep.subr.bf16.mxu0 0
      %708 = vmatpush1.bf16.msra.mxu0 0
      %709 = vmatprep.subr.bf16.mxu0 0
      %710 = vmatpush1.bf16.msra.mxu0 0
      %711 = vmatprep.subr.bf16.mxu0 0
      %712 = vmatpush1.bf16.msra.mxu0 0
      %713 = vmatprep.subr.bf16.mxu0 0
      %714 = vmatpush1.bf16.msra.mxu0 0
      %715 = vmatprep.subr.bf16.mxu0 0
      %716 = vmatpush1.bf16.msra.mxu0 0
      %717 = vmatprep.subr.bf16.mxu0 0
      %718 = vmatpush1.bf16.msra.mxu0 0
      %719 = vmatprep.subr.bf16.mxu0 0
      %720 = vmatpush1.bf16.msra.mxu0 0
      %721 = vmatprep.subr.bf16.mxu0 0
      %722 = vmatpush1.bf16.msra.mxu0 0
      %723 = vmatprep.subr.bf16.mxu0 0
      %724 = vmatpush1.bf16.msra.mxu0 0
      %725 = vmatprep.subr.bf16.mxu0 0
      %726 = vmatpush1.bf16.msra.mxu0 0
      %727 = vmatprep.mubr.bf16.mxu0 0
      %728 = vmatmul.mubr.bf16.gmra.mrb[0].mxu0 %v690
      %v729 = vpop.f32.mrb[0].mxu0
      %v730 = vadd.f32 0.0, %v729
      %v731 = vpop.f32.mrb[0].mxu0
      %v732 = vadd.f32 0.0, %v731
      %v733 = vpop.f32.mrb[0].mxu0
      %v734 = vadd.f32 0.0, %v733
      %v735 = vpop.f32.mrb[0].mxu0
      %v736 = vadd.f32 0.0, %v735
      %737 = vmatprep.mubr.bf16.mxu0 0
      %738 = vmatmul.mubr.bf16.gmra.mrb[0].mxu0 %v693
      %v739 = vpop.f32.mrb[0].mxu0
      %v740 = vadd.f32 0.0, %v739
      %v741 = vpop.f32.mrb[0].mxu0
      %v742 = vadd.f32 0.0, %v741
      %v743 = vpop.f32.mrb[0].mxu0
      %v744 = vadd.f32 0.0, %v743
      %v745 = vpop.f32.mrb[0].mxu0
      %v746 = vadd.f32 0.0, %v745
      %747 = vdwg.mxu0
      %v748 = vadd.f32 %v625, %v730
      %v749 = vadd.f32 %v627, %v732
      %v750 = vadd.f32 %v629, %v734
      %v751 = vadd.f32 %v631, %v736
      %v752 = vadd.f32 %v635, %v740
      %v753 = vadd.f32 %v637, %v742
      %v754 = vadd.f32 %v639, %v744
      %v755 = vadd.f32 %v641, %v746
      %v756 = vadd.f32 %v748, %v749
      %757 = vadd.xlane.f32.xlu0 %v756
      %v758 = vpop.xlane.xlu0 %757
      %v759 = vadd.f32 %v750, %v751
      %760 = vadd.xlane.f32.xlu0 %v759
      %v761 = vpop.xlane.xlu0 %760
      %v762 = vadd.f32 %v752, %v753
      %763 = vadd.xlane.f32.xlu0 %v762
      %v764 = vpop.xlane.xlu0 %763
      %v765 = vadd.f32 %v754, %v755
      %766 = vadd.xlane.f32.xlu0 %v765
      %v767 = vpop.xlane.xlu0 %766
      %v768 = vmul.f32 %v748, %v748
      %v769 = vmul.f32 %v749, %v749
      %v770 = vmul.f32 %v750, %v750
      %v771 = vmul.f32 %v751, %v751
      %v772 = vmul.f32 %v752, %v752
      %v773 = vmul.f32 %v753, %v753
      %v774 = vmul.f32 %v754, %v754
      %v775 = vmul.f32 %v755, %v755
      %v776 = vadd.f32 %v768, %v769
      %777 = vadd.xlane.f32.xlu0 %v776
      %v778 = vpop.xlane.xlu0 %777
      %v779 = vadd.f32 %v770, %v771
      %780 = vadd.xlane.f32.xlu0 %v779
      %v781 = vpop.xlane.xlu0 %780
      %v782 = vadd.f32 %v772, %v773
      %783 = vadd.xlane.f32.xlu0 %v782
      %v784 = vpop.xlane.xlu0 %783
      %v785 = vadd.f32 %v774, %v775
      %786 = vadd.xlane.f32.xlu0 %v785
      %v787 = vpop.xlane.xlu0 %786
      %v788 = vld [vmem:[%s2] sm:$0xff]
      %v789 = vld [vmem:[%s2 + $0x8] sm:$0xff]
      %v790 = vld [vmem:[%s2 + $0x10] sm:$0xff]
      %v791 = vld [vmem:[%s2 + $0x18] sm:$0xff]
      %vm792 = vcmask 7168
      %v793 = vsel %vm792, %v758, %v778
      %v794 = vsel %vm792, %v761, %v781
      %v795 = vsel %vm792, %v764, %v784
      %v796 = vsel %vm792, %v767, %v787
      %vm797 = vcmask 261120
      %v799 = vsel %vm797, %v788, 0
      %v802 = vsel %vm797, %v789, 0
      %v805 = vsel %vm797, %v790, 0
      %v808 = vsel %vm797, %v791, 0
      %810 = vmatprep.subr.mxu0 0.0
      %811 = vmatpush1.msra.mxu0 %v793
      %812 = vmatprep.subr.mxu0 0.0
      %813 = vmatpush1.msra.mxu0 %v794
      %814 = vmatprep.subr.mxu0 0.0
      %815 = vmatpush1.msra.mxu0 %v795
      %816 = vmatprep.subr.mxu0 0.0
      %817 = vmatpush1.msra.mxu0 %v796
      %818 = vmatprep.subr.mxu0 0.0
      %819 = vmatpush1.msra.mxu0 0.0
      %820 = vmatprep.subr.mxu0 0.0
      %821 = vmatpush1.msra.mxu0 0.0
      %822 = vmatprep.subr.mxu0 0.0
      %823 = vmatpush1.msra.mxu0 0.0
      %824 = vmatprep.subr.mxu0 0.0
      %825 = vmatpush1.msra.mxu0 0.0
      %826 = vmatprep.subr.mxu0 0.0
      %827 = vmatpush1.msra.mxu0 0.0
      %828 = vmatprep.subr.mxu0 0.0
      %829 = vmatpush1.msra.mxu0 0.0
      %830 = vmatprep.subr.mxu0 0.0
      %831 = vmatpush1.msra.mxu0 0.0
      %832 = vmatprep.subr.mxu0 0.0
      %833 = vmatpush1.msra.mxu0 0.0
      %834 = vmatprep.subr.mxu0 0.0
      %835 = vmatpush1.msra.mxu0 0.0
      %836 = vmatprep.subr.mxu0 0.0
      %837 = vmatpush1.msra.mxu0 0.0
      %838 = vmatprep.subr.mxu0 0.0
      %839 = vmatpush1.msra.mxu0 0.0
      %840 = vmatprep.subr.mxu0 0.0
      %841 = vmatpush1.msra.mxu0 0.0
      %842 = vmatprep.subr.mxu0 0.0
      %843 = vmatpush1.msra.mxu0 0.0
      %844 = vmatprep.subr.mxu0 0.0
      %845 = vmatpush1.msra.mxu0 0.0
      %846 = vmatprep.subr.mxu0 0.0
      %847 = vmatpush1.msra.mxu0 0.0
      %848 = vmatprep.subr.mxu0 0.0
      %849 = vmatpush1.msra.mxu0 0.0
      %850 = vmatprep.subr.mxu0 0.0
      %851 = vmatpush1.msra.mxu0 0.0
      %852 = vmatprep.subr.mxu0 0.0
      %853 = vmatpush1.msra.mxu0 0.0
      %854 = vmatprep.subr.mxu0 0.0
      %855 = vmatpush1.msra.mxu0 0.0
      %856 = vmatprep.subr.mxu0 0.0
      %857 = vmatpush1.msra.mxu0 0.0
      %858 = vmatprep.subr.mxu0 0.0
      %859 = vmatpush1.msra.mxu0 0.0
      %860 = vmatprep.subr.mxu0 0.0
      %861 = vmatpush1.msra.mxu0 0.0
      %862 = vmatprep.subr.mxu0 0.0
      %863 = vmatpush1.msra.mxu0 0.0
      %864 = vmatprep.subr.mxu0 0.0
      %865 = vmatpush1.msra.mxu0 0.0
      %866 = vmatprep.subr.mxu0 0.0
      %867 = vmatpush1.msra.mxu0 0.0
      %868 = vmatprep.subr.mxu0 0.0
      %869 = vmatpush1.msra.mxu0 0.0
      %870 = vmatprep.subr.mxu0 0.0
      %871 = vmatpush1.msra.mxu0 0.0
      %872 = vmatprep.subr.mxu0 0.0
      %873 = vmatpush1.msra.mxu0 0.0
      %874 = vmatprep.mubr.f32.mxu0 0.0
      %875 = vmatmul.mubr.f32.gmra.mrb[0].mxu0 %v799
      %v876 = vpop.f32.mrb[0].mxu0
      %v877 = vadd.f32 0.0, %v876
      %v878 = vpop.f32.mrb[0].mxu0
      %879 = vmatprep.mubr.f32.mxu0 0.0
      %880 = vmatmul.mubr.f32.gmra.mrb[0].mxu0 %v802
      %v881 = vpop.f32.mrb[0].mxu0
      %v882 = vadd.f32 0.0, %v881
      %v883 = vpop.f32.mrb[0].mxu0
      %884 = vmatprep.mubr.f32.mxu0 0.0
      %885 = vmatmul.mubr.f32.gmra.mrb[0].mxu0 %v805
      %v886 = vpop.f32.mrb[0].mxu0
      %v887 = vadd.f32 0.0, %v886
      %v888 = vpop.f32.mrb[0].mxu0
      %889 = vmatprep.mubr.f32.mxu0 0.0
      %890 = vmatmul.mubr.f32.gmra.mrb[0].mxu0 %v808
      %v891 = vpop.f32.mrb[0].mxu0
      %v892 = vadd.f32 0.0, %v891
      %v893 = vpop.f32.mrb[0].mxu0
      %894 = vdwg.mxu0
      %v895 = vmul.f32 %v877, %v877
      %v896 = vmul.f32 %v882, %v882
      %v897 = vmul.f32 %v887, %v887
      %v898 = vmul.f32 %v892, %v892
      %903 = vrot.lane.b32.xlu0 %v895, 1
      %v904 = vpop.permute.xlu0 %903
      %905 = vrot.lane.b32.xlu0 %v896, 1
      %v906 = vpop.permute.xlu0 %905
      %907 = vrot.lane.b32.xlu0 %v897, 1
      %v908 = vpop.permute.xlu0 %907
      %909 = vrot.lane.b32.xlu0 %v898, 1
      %v910 = vpop.permute.xlu0 %909
      %v915 = vsub.f32 %v877, %v904
      %v916 = vsub.f32 %v882, %v906
      %v917 = vsub.f32 %v887, %v908
      %v918 = vsub.f32 %v892, %v910
      %v919 = vmax.f32 %v915, 0.0
      %v920 = vmax.f32 %v916, 0.0
      %v921 = vmax.f32 %v917, 0.0
      %v922 = vmax.f32 %v918, 0.0
      %v923 = vadd.f32 %v919, 1e-05
      %v924 = vadd.f32 %v920, 1e-05
      %v925 = vadd.f32 %v921, 1e-05
      %v926 = vadd.f32 %v922, 1e-05
      %v927 = vrsqrt.pop %v923
      %v928 = vrsqrt.pop %v924
      %v929 = vrsqrt.pop %v925
      %v930 = vrsqrt.pop %v926
      %v931 = vld [vmem:[%s3] sm:$0xff]
      %v932 = vld [vmem:[%s3 + $0x8] sm:$0xff]
      %v933 = vld [vmem:[%s3 + $0x10] sm:$0xff]
      %v934 = vld [vmem:[%s3 + $0x18] sm:$0xff]
      %939 = vrot.lane.b32.xlu0 %v931, 1
      %v940 = vpop.permute.xlu0 %939
      %941 = vrot.lane.b32.xlu0 %v932, 1
      %v942 = vpop.permute.xlu0 %941
      %943 = vrot.lane.b32.xlu0 %v933, 1
      %v944 = vpop.permute.xlu0 %943
      %945 = vrot.lane.b32.xlu0 %v934, 1
      %v946 = vpop.permute.xlu0 %945
      %v951 = vmul.f32 %v927, %v940
      %v952 = vmul.f32 %v928, %v942
      %v953 = vmul.f32 %v929, %v944
      %v954 = vmul.f32 %v930, %v946
      %v955 = vld [vmem:[%s4] sm:$0xff]
      %v956 = vld [vmem:[%s4 + $0x8] sm:$0xff]
      %v957 = vld [vmem:[%s4 + $0x10] sm:$0xff]
      %v958 = vld [vmem:[%s4 + $0x18] sm:$0xff]
      %963 = vrot.lane.b32.xlu0 %v951, 127
      %v964 = vpop.permute.xlu0 %963
      %965 = vrot.lane.b32.xlu0 %v952, 127
      %v966 = vpop.permute.xlu0 %965
      %967 = vrot.lane.b32.xlu0 %v953, 127
      %v968 = vpop.permute.xlu0 %967
      %969 = vrot.lane.b32.xlu0 %v954, 127
      %v970 = vpop.permute.xlu0 %969
      %v975 = vmul.f32 %v877, %v964
      %v976 = vmul.f32 %v882, %v966
      %v977 = vmul.f32 %v887, %v968
      %v978 = vmul.f32 %v892, %v970
      %v979 = vsub.f32 %v955, %v975
      %v980 = vsub.f32 %v956, %v976
      %v981 = vsub.f32 %v957, %v977
      %v982 = vsub.f32 %v958, %v978
      %983 = vset.pattern.permute.xlu0 1
      %984 = vperm.xlu0 %983, %v951
      %v985 = vpop.permute.xlu0 %984
      %987 = vset.pattern.permute.xlu0 1
      %988 = vperm.xlu0 %987, %v952
      %v989 = vpop.permute.xlu0 %988
      %991 = vset.pattern.permute.xlu0 1
      %992 = vperm.xlu0 %991, %v953
      %v993 = vpop.permute.xlu0 %992
      %995 = vset.pattern.permute.xlu0 1
      %996 = vperm.xlu0 %995, %v954
      %v997 = vpop.permute.xlu0 %996
      %v999 = vmul.f32 %v748, %v985
      %v1000 = vmul.f32 %v749, %v985
      %v1001 = vmul.f32 %v750, %v989
      %v1002 = vmul.f32 %v751, %v989
      %v1003 = vmul.f32 %v752, %v993
      %v1004 = vmul.f32 %v753, %v993
      %v1005 = vmul.f32 %v754, %v997
      %v1006 = vmul.f32 %v755, %v997
      %1008 = vset.pattern.permute.xlu0 0
      %1009 = vperm.xlu0 %1008, %v979
      %v1010 = vpop.permute.xlu0 %1009
      %1013 = vset.pattern.permute.xlu0 0
      %1014 = vperm.xlu0 %1013, %v980
      %v1015 = vpop.permute.xlu0 %1014
      %1018 = vset.pattern.permute.xlu0 0
      %1019 = vperm.xlu0 %1018, %v981
      %v1020 = vpop.permute.xlu0 %1019
      %1023 = vset.pattern.permute.xlu0 0
      %1024 = vperm.xlu0 %1023, %v982
      %v1025 = vpop.permute.xlu0 %1024
      %v1027 = vadd.f32 %v999, %v1010
      %v1028 = vadd.f32 %v1000, %v1010
      %v1029 = vadd.f32 %v1001, %v1015
      %v1030 = vadd.f32 %v1002, %v1015
      %v1031 = vadd.f32 %v1003, %v1020
      %v1032 = vadd.f32 %v1004, %v1020
      %v1033 = vadd.f32 %v1005, %v1025
      %v1034 = vadd.f32 %v1006, %v1025
      %v1035 = vmax.f32 %v1027, 0.0
      %v1036 = vmax.f32 %v1028, 0.0
      %v1037 = vmax.f32 %v1029, 0.0
      %v1038 = vmax.f32 %v1030, 0.0
      %v1039 = vmax.f32 %v1031, 0.0
      %v1040 = vmax.f32 %v1032, 0.0
      %v1041 = vmax.f32 %v1033, 0.0
      %v1042 = vmax.f32 %v1034, 0.0
      %v1043 = vld [vmem:[%s5] sm:$0xf]
      %v1044 = vld [vmem:[%s5 + $0x4] sm:$0xf]
      %v1045 = vpack.c.bf16 %v1037, %v1035
      %v1046 = vpack.c.bf16 %v1038, %v1036
      %v1047 = vpack.c.bf16 %v1041, %v1039
      %v1048 = vpack.c.bf16 %v1042, %v1040
      %v1049 = vld [vmem:[%s6] sm:$0xff]
      %v1050 = vld [vmem:[%s6 + $0x8] sm:$0xff]
      %1052 = vset.pattern.permute.xlu0 0
      %1053 = vperm.xlu0 %1052, %v1049
      %v1054 = vpop.permute.xlu0 %1053
      %1057 = vset.pattern.permute.xlu0 0
      %1058 = vperm.xlu0 %1057, %v1050
      %v1059 = vpop.permute.xlu0 %1058
      %v1063 = vunpack.c.l.b16 %v1043
      %v1064 = vunpack.c.l.b16 %v1044
      %v1065 = vpack.c.b16 %v1064, %v1063
      %v1067 = vsel %vm797, %v1065, 0
      %1069 = vmatprep.subr.bf16.mxu0 %v1046
      %1070 = vmatpush1.bf16.msra.mxu0 %v1045
      %1071 = vmatprep.subr.bf16.mxu0 %v1048
      %1072 = vmatpush1.bf16.msra.mxu0 %v1047
      %1073 = vmatprep.subr.bf16.mxu0 0
      %1074 = vmatpush1.bf16.msra.mxu0 0
      %1075 = vmatprep.subr.bf16.mxu0 0
      %1076 = vmatpush1.bf16.msra.mxu0 0
      %1077 = vmatprep.subr.bf16.mxu0 0
      %1078 = vmatpush1.bf16.msra.mxu0 0
      %1079 = vmatprep.subr.bf16.mxu0 0
      %1080 = vmatpush1.bf16.msra.mxu0 0
      %1081 = vmatprep.subr.bf16.mxu0 0
      %1082 = vmatpush1.bf16.msra.mxu0 0
      %1083 = vmatprep.subr.bf16.mxu0 0
      %1084 = vmatpush1.bf16.msra.mxu0 0
      %1085 = vmatprep.subr.bf16.mxu0 0
      %1086 = vmatpush1.bf16.msra.mxu0 0
      %1087 = vmatprep.subr.bf16.mxu0 0
      %1088 = vmatpush1.bf16.msra.mxu0 0
      %1089 = vmatprep.subr.bf16.mxu0 0
      %1090 = vmatpush1.bf16.msra.mxu0 0
      %1091 = vmatprep.subr.bf16.mxu0 0
      %1092 = vmatpush1.bf16.msra.mxu0 0
      %1093 = vmatprep.subr.bf16.mxu0 0
      %1094 = vmatpush1.bf16.msra.mxu0 0
      %1095 = vmatprep.subr.bf16.mxu0 0
      %1096 = vmatpush1.bf16.msra.mxu0 0
      %1097 = vmatprep.subr.bf16.mxu0 0
      %1098 = vmatpush1.bf16.msra.mxu0 0
      %1099 = vmatprep.subr.bf16.mxu0 0
      %1100 = vmatpush1.bf16.msra.mxu0 0
      %1101 = vmatprep.mubr.bf16.mxu0 0
      %1102 = vmatmul.mubr.bf16.gmra.mrb[0].mxu0 %v1067
      %v1103 = vpop.f32.mrb[0].mxu0
      %v1104 = vadd.f32 %v1054, %v1103
      %v1105 = vpop.f32.mrb[0].mxu0
      %v1106 = vadd.f32 %v1054, %v1105
      %v1107 = vpop.f32.mrb[0].mxu0
      %v1108 = vadd.f32 %v1059, %v1107
      %v1109 = vpop.f32.mrb[0].mxu0
      %v1110 = vadd.f32 %v1059, %v1109
      %1111 = vdwg.mxu0
      %1112 = vst [vmem:[%s278] sm:$0xff] %v1104
      %1113 = vst [vmem:[%s278 + $0x8] sm:$0xff] %v1106
      %1114 = vst [vmem:[%s278 + $0x10] sm:$0xff] %v1108
      %1115 = vst [vmem:[%s278 + $0x18] sm:$0xff] %v1110
      %p1116 = scmp.lt.s32.totalorder %s18, 1
      %s1117 = scalar_select %p1116, %s18, 1
      %s1118 = smul.addr %s1117, 4
      %s1119 = smul.addr %s1118, 8
      %s1120 = scalar_lea.vmem %s7, %s1119
      // Predicated region
      $region49: #{_forward_impl.1} parent=47 // pred_check
        %p1121 = pneg %p188
      $region50: #{_forward_impl.1} parent=47 // pred_check_branch
        %1123 = sbr.rel (%p1121) target = $region52
      $region51: #{_forward_impl.1} parent=47 // pred_region
        _
      $region52: #{_forward_impl.1} parent=47 // pred_fallthru
        _
    $region48: #{_forward_impl.1} parent=5 // pred_fallthru
      _
    %p1124 = scmp.le.s32.totalorder 2, %s13
    // Predicated region
    $region53: #{_forward_impl.1} parent=5 // pred_check
      %p1125 = pneg %p1124
    $region54: #{_forward_impl.1} parent=5 // pred_check_branch
      %1127 = sbr.rel (%p1125) target = $region56
    $region55: #{_forward_impl.1} parent=5 // pred_region
      %s1128 = ssub.s32 %s13, 2
      // Predicated region
      $region57: #{_forward_impl.1} parent=55 // pred_check
        %p1129 = pneg %p194
      $region58: #{_forward_impl.1} parent=55 // pred_check_branch
        %1131 = sbr.rel (%p1129) target = $region60
      $region59: #{_forward_impl.1} parent=55 // pred_region
        %p1132 = scmp.lt.s32.totalorder %s19, 1
        %s1133 = scalar_select %p1132, %s19, 1
        %s1134 = smul.addr %s1133, 4
        %s1135 = smul.addr %s1134, 8
        %s1136 = scalar_lea.vmem %s7, %s1135
      $region60: #{_forward_impl.1} parent=55 // pred_fallthru
        _
    $region56: #{_forward_impl.1} parent=5 // pred_fallthru
      _
  $region6: #{_forward_impl.1} parent=0 // loop_footer
    %s17 = sadd.s32 1, %s13
  $region7: #{_forward_impl.1} parent=0 // loop_footer_branch
    %12 = sbr.rel target = $region3
  $region8: #{_forward_impl.1} parent=0 // loop_exit
    _

// kernel: _forward_impl.1
$region0: #{_forward_impl.1}
  #allocation0 [shape = 'u32[]', space=smem, size = 0x4, offset = 0x4, fixed_abs, tag = 'smem constant byte address 0x4 - core index']
  #allocation1 [shape = 'u32[144,128]{1,0:T(1,128)}', space=vmem, size = 0x12000, scoped, tag = 'internal scratch']
  #allocation2 [shape = 'bf16[16,512]{1,0:T(16,128)(2,1)}', space=vmem, size = 0x4000, scoped, tag = 'scratch operand']
  %s0 = inlined_call_operand.vmem [shape: f32[2,16,256], index: 0, kind: input, shape index: {}]
  %s1 = inlined_call_operand.vmem [shape: bf16[3,32,48], index: 1, kind: input, shape index: {}]
  %s2 = inlined_call_operand.vmem [shape: f32[32,32], index: 2, kind: input, shape index: {}]
  %s3 = inlined_call_operand.vmem [shape: f32[32,1], index: 3, kind: input, shape index: {}]
  %s4 = inlined_call_operand.vmem [shape: f32[32,1], index: 4, kind: input, shape index: {}]
  %s5 = inlined_call_operand.vmem [shape: bf16[16,32], index: 5, kind: input, shape index: {}]
  %s6 = inlined_call_operand.vmem [shape: f32[16,1], index: 6, kind: input, shape index: {}]
  %s7 = inlined_call_operand.vmem [shape: f32[2,16,256], index: 7, kind: output, shape index: {}]
  %s8 = sld [smem:[#allocation0]]
  $region61: #{_forward_impl.1} parent=0
    _
  %s10 = ssub.s32 1, %s8
  %s11 = scalar_select 0, %s10, %s8
  loop: start=0, step=1, limit=4
  $region2: #{_forward_impl.1} parent=0 // loop_pre_header
    _
  $region3: #{_forward_impl.1} parent=0 // loop_header
    %s13 = sphi 0, %s17
    %p14 = scmp.ge.s32.totalorder %s13, 4
    %s23 = sphi 0, %s25
    %s26 = sphi 0, %s23
    %s27 = sphi 0, %s26
    %s43 = sphi 0, %s27
    %s47 = sphi 0, %s47
    %s49 = sphi 0, %s47
    %s50 = sphi 0, %s49
    %s64 = sphi 0, %s50
    %s68 = sphi 0, %s68
    %s70 = sphi 0, %s68
    %s71 = sphi 0, %s70
    %s85 = sphi 0, %s71
    %s89 = sphi 0, %s89
    %s91 = sphi 0, %s89
    %s92 = sphi 0, %s91
    %s106 = sphi 0, %s92
    %s110 = sphi 0, %s110
    %s112 = sphi 0, %s110
    %s113 = sphi 0, %s112
    %s127 = sphi 0, %s113
    %s131 = sphi 0, %s131
    %s133 = sphi 0, %s131
    %s134 = sphi 0, %s133
    %s148 = sphi 0, %s134
    %s152 = sphi 0, %s152
    %s154 = sphi 0, %s152
    %s155 = sphi 0, %s154
    %s169 = sphi 0, %s155
    %s175 = sphi 0, %s177
    %s178 = sphi 0, %s175
    %s179 = sphi 0, %s178
    %s195 = sphi 0, %s179
  $region4: #{_forward_impl.1} parent=0 // loop_header_branch
    %16 = sbr.rel (%p14) target = $region8
  $region5: #{_forward_impl.1} parent=0 // loop_body
    %s18 = ssub.s32 %s13, 1
    %s19 = ssub.s32 %s13, 2
    %s20 = sadd.s32 %s13, 1
    %s21 = ssub.s32 %s13, %s20
    %p22 = scmp.eq.s32.totalorder %s21, 0
    %s24 = sadd.s32 %s23, 1
    %s25 = scalar_select %p22, %s23, %s24
    %p28 = pneg %p22
    %p29 = scmp.eq.s32.totalorder %s13, 1
    %p30 = por %p28, %p29
    %p31 = scmp.ne.s32.totalorder %s23, %s26
    %p32 = scmp.eq.s32.totalorder %s13, 0
    %p33 = por %p31, %p32
    %p34 = scmp.ne.s32.totalorder %s23, %s26
    %p35 = scmp.eq.s32.totalorder %s18, 1
    %p36 = por %p34, %p35
    %p37 = scmp.ne.s32.totalorder %s26, %s27
    %p38 = scmp.eq.s32.totalorder %s18, 0
    %p39 = por %p37, %p38
    %p40 = scmp.ne.s32.totalorder %s26, %s27
    %p41 = scmp.eq.s32.totalorder %s19, 1
    %p42 = por %p40, %p41
    %p44 = scmp.ne.s32.totalorder %s27, %s43
    %p45 = scmp.eq.s32.totalorder %s19, 0
    %p46 = por %p44, %p45
    %s48 = sadd.s32 %s47, 1
    %p51 = scmp.eq.s32.totalorder %s13, 1
    %p52 = scmp.ne.s32.totalorder %s47, %s49
    %p53 = scmp.eq.s32.totalorder %s13, 0
    %p54 = por %p52, %p53
    %p55 = scmp.ne.s32.totalorder %s47, %s49
    %p56 = scmp.eq.s32.totalorder %s18, 1
    %p57 = por %p55, %p56
    %p58 = scmp.ne.s32.totalorder %s49, %s50
    %p59 = scmp.eq.s32.totalorder %s18, 0
    %p60 = por %p58, %p59
    %p61 = scmp.ne.s32.totalorder %s49, %s50
    %p62 = scmp.eq.s32.totalorder %s19, 1
    %p63 = por %p61, %p62
    %p65 = scmp.ne.s32.totalorder %s50, %s64
    %p66 = scmp.eq.s32.totalorder %s19, 0
    %p67 = por %p65, %p66
    %s69 = sadd.s32 %s68, 1
    %p72 = scmp.eq.s32.totalorder %s13, 1
    %p73 = scmp.ne.s32.totalorder %s68, %s70
    %p74 = scmp.eq.s32.totalorder %s13, 0
    %p75 = por %p73, %p74
    %p76 = scmp.ne.s32.totalorder %s68, %s70
    %p77 = scmp.eq.s32.totalorder %s18, 1
    %p78 = por %p76, %p77
    %p79 = scmp.ne.s32.totalorder %s70, %s71
    %p80 = scmp.eq.s32.totalorder %s18, 0
    %p81 = por %p79, %p80
    %p82 = scmp.ne.s32.totalorder %s70, %s71
    %p83 = scmp.eq.s32.totalorder %s19, 1
    %p84 = por %p82, %p83
    %p86 = scmp.ne.s32.totalorder %s71, %s85
    %p87 = scmp.eq.s32.totalorder %s19, 0
    %p88 = por %p86, %p87
    %s90 = sadd.s32 %s89, 1
    %p93 = scmp.eq.s32.totalorder %s13, 1
    %p94 = scmp.ne.s32.totalorder %s89, %s91
    %p95 = scmp.eq.s32.totalorder %s13, 0
    %p96 = por %p94, %p95
    %p97 = scmp.ne.s32.totalorder %s89, %s91
    %p98 = scmp.eq.s32.totalorder %s18, 1
    %p99 = por %p97, %p98
    %p100 = scmp.ne.s32.totalorder %s91, %s92
    %p101 = scmp.eq.s32.totalorder %s18, 0
    %p102 = por %p100, %p101
    %p103 = scmp.ne.s32.totalorder %s91, %s92
    %p104 = scmp.eq.s32.totalorder %s19, 1
    %p105 = por %p103, %p104
    %p107 = scmp.ne.s32.totalorder %s92, %s106
    %p108 = scmp.eq.s32.totalorder %s19, 0
    %p109 = por %p107, %p108
    %s111 = sadd.s32 %s110, 1
    %p114 = scmp.eq.s32.totalorder %s13, 1
    %p115 = scmp.ne.s32.totalorder %s110, %s112
    %p116 = scmp.eq.s32.totalorder %s13, 0
    %p117 = por %p115, %p116
    %p118 = scmp.ne.s32.totalorder %s110, %s112
    %p119 = scmp.eq.s32.totalorder %s18, 1
    %p120 = por %p118, %p119
    %p121 = scmp.ne.s32.totalorder %s112, %s113
    %p122 = scmp.eq.s32.totalorder %s18, 0
    %p123 = por %p121, %p122
    %p124 = scmp.ne.s32.totalorder %s112, %s113
    %p125 = scmp.eq.s32.totalorder %s19, 1
    %p126 = por %p124, %p125
    %p128 = scmp.ne.s32.totalorder %s113, %s127
    %p129 = scmp.eq.s32.totalorder %s19, 0
    %p130 = por %p128, %p129
    %s132 = sadd.s32 %s131, 1
    %p135 = scmp.eq.s32.totalorder %s13, 1
    %p136 = scmp.ne.s32.totalorder %s131, %s133
    %p137 = scmp.eq.s32.totalorder %s13, 0
    %p138 = por %p136, %p137
    %p139 = scmp.ne.s32.totalorder %s131, %s133
    %p140 = scmp.eq.s32.totalorder %s18, 1
    %p141 = por %p139, %p140
    %p142 = scmp.ne.s32.totalorder %s133, %s134
    %p143 = scmp.eq.s32.totalorder %s18, 0
    %p144 = por %p142, %p143
    %p145 = scmp.ne.s32.totalorder %s133, %s134
    %p146 = scmp.eq.s32.totalorder %s19, 1
    %p147 = por %p145, %p146
    %p149 = scmp.ne.s32.totalorder %s134, %s148
    %p150 = scmp.eq.s32.totalorder %s19, 0
    %p151 = por %p149, %p150
    %s153 = sadd.s32 %s152, 1
    %p156 = scmp.eq.s32.totalorder %s13, 1
    %p157 = scmp.ne.s32.totalorder %s152, %s154
    %p158 = scmp.eq.s32.totalorder %s13, 0
    %p159 = por %p157, %p158
    %p160 = scmp.ne.s32.totalorder %s152, %s154
    %p161 = scmp.eq.s32.totalorder %s18, 1
    %p162 = por %p160, %p161
    %p163 = scmp.ne.s32.totalorder %s154, %s155
    %p164 = scmp.eq.s32.totalorder %s18, 0
    %p165 = por %p163, %p164
    %p166 = scmp.ne.s32.totalorder %s154, %s155
    %p167 = scmp.eq.s32.totalorder %s19, 1
    %p168 = por %p166, %p167
    %p170 = scmp.ne.s32.totalorder %s155, %s169
    %p171 = scmp.eq.s32.totalorder %s19, 0
    %p172 = por %p170, %p171
    %s173 = ssub.s32 %s13, %s20
    %p174 = scmp.eq.s32.totalorder %s173, 0
    %s176 = sadd.s32 %s175, 1
    %s177 = scalar_select %p174, %s175, %s176
    %p180 = pneg %p174
    %p181 = scmp.eq.s32.totalorder %s13, 1
    %p182 = por %p180, %p181
    %p183 = scmp.ne.s32.totalorder %s175, %s178
    %p184 = scmp.eq.s32.totalorder %s13, 0
    %p185 = por %p183, %p184
    %p186 = scmp.ne.s32.totalorder %s175, %s178
    %p187 = scmp.eq.s32.totalorder %s18, 1
    %p188 = por %p186, %p187
    %p189 = scmp.ne.s32.totalorder %s178, %s179
    %p190 = scmp.eq.s32.totalorder %s18, 0
    %p191 = por %p189, %p190
    %p192 = scmp.ne.s32.totalorder %s178, %s179
    %p193 = scmp.eq.s32.totalorder %s19, 1
    %p194 = por %p192, %p193
    %p196 = scmp.ne.s32.totalorder %s179, %s195
    %p197 = scmp.eq.s32.totalorder %s19, 0
    %p198 = por %p196, %p197
    %p199 = scmp.le.s32.totalorder 1, %s13
    %p200 = scmp.lt.s32.totalorder %s13, 3
    %p201 = pnand %p199, %p200
    %p202 = pneg %p201
    // Predicated region
    $region9: #{_forward_impl.1} parent=5 // pred_check
      _
    $region10: #{_forward_impl.1} parent=5 // pred_check_branch
      %204 = sbr.rel (%p201) target = $region12
    $region11: #{_forward_impl.1} parent=5 // pred_region
      %s205 = ssub.s32 %s13, 1
      // Predicated region
      $region13: #{_forward_impl.1} parent=11 // pred_check
        %p206 = pneg %p60
      $region14: #{_forward_impl.1} parent=11 // pred_check_branch
        %208 = sbr.rel (%p206) target = $region16
      $region15: #{_forward_impl.1} parent=11 // pred_region
        _
      $region16: #{_forward_impl.1} parent=11 // pred_fallthru
        _
      // Predicated region
      $region17: #{_forward_impl.1} parent=11 // pred_check
        %p209 = pneg %p81
      $region18: #{_forward_impl.1} parent=11 // pred_check_branch
        %211 = sbr.rel (%p209) target = $region20
      $region19: #{_forward_impl.1} parent=11 // pred_region
        _
      $region20: #{_forward_impl.1} parent=11 // pred_fallthru
        _
      // Predicated region
      $region21: #{_forward_impl.1} parent=11 // pred_check
        %p212 = pneg %p102
      $region22: #{_forward_impl.1} parent=11 // pred_check_branch
        %214 = sbr.rel (%p212) target = $region24
      $region23: #{_forward_impl.1} parent=11 // pred_region
        _
      $region24: #{_forward_impl.1} parent=11 // pred_fallthru
        _
      // Predicated region
      $region25: #{_forward_impl.1} parent=11 // pred_check
        %p215 = pneg %p123
      $region26: #{_forward_impl.1} parent=11 // pred_check_branch
        %217 = sbr.rel (%p215) target = $region28
      $region27: #{_forward_impl.1} parent=11 // pred_region
        _
      $region28: #{_forward_impl.1} parent=11 // pred_fallthru
        _
      // Predicated region
      $region29: #{_forward_impl.1} parent=11 // pred_check
        %p218 = pneg %p144
      $region30: #{_forward_impl.1} parent=11 // pred_check_branch
        %220 = sbr.rel (%p218) target = $region32
      $region31: #{_forward_impl.1} parent=11 // pred_region
        _
      $region32: #{_forward_impl.1} parent=11 // pred_fallthru
        _
      // Predicated region
      $region33: #{_forward_impl.1} parent=11 // pred_check
        %p221 = pneg %p165
      $region34: #{_forward_impl.1} parent=11 // pred_check_branch
        %223 = sbr.rel (%p221) target = $region36
      $region35: #{_forward_impl.1} parent=11 // pred_region
        _
      $region36: #{_forward_impl.1} parent=11 // pred_fallthru
        _
    $region12: #{_forward_impl.1} parent=5 // pred_fallthru
      _
    %p224 = scmp.lt.s32.totalorder %s13, 2
    // Predicated region
    $region37: #{_forward_impl.1} parent=5 // pred_check
      %p225 = pneg %p224
    $region38: #{_forward_impl.1} parent=5 // pred_check_branch
      %227 = sbr.rel (%p225) target = $region40
    $region39: #{_forward_impl.1} parent=5 // pred_region
      // Predicated region
      $region41: #{_forward_impl.1} parent=39 // pred_check
        %p228 = pneg %p33
      $region42: #{_forward_impl.1} parent=39 // pred_check_branch
        %230 = sbr.rel (%p228) target = $region44
      $region43: #{_forward_impl.1} parent=39 // pred_region
        %p231 = scmp.lt.s32.totalorder %s13, 1
        %s232 = scalar_select %p231, %s13, 1
        %s233 = smul.addr %s232, 4
        %s234 = smul.addr %s233, 8
        %s235 = scalar_lea.vmem %s0, %s234
      $region44: #{_forward_impl.1} parent=39 // pred_fallthru
        _
    $region40: #{_forward_impl.1} parent=5 // pred_fallthru
      _
    %p236 = scmp.le.s32.totalorder 1, %s13
    %p237 = scmp.lt.s32.totalorder %s13, 3
    %p238 = pnand %p236, %p237
    %p239 = pneg %p238
    // Predicated region
    $region45: #{_forward_impl.1} parent=5 // pred_check
      _
    $region46: #{_forward_impl.1} parent=5 // pred_check_branch
      %241 = sbr.rel (%p238) target = $region48
    $region47: #{_forward_impl.1} parent=5 // pred_region
      %s242 = ssub.s32 %s13, 1
      %p243 = scmp.lt.s32.totalorder %s18, 1
      %s244 = scalar_select %p243, %s18, 1
      %s245 = smul.addr %s244, 4
      %s246 = smul.addr %s245, 8
      %s247 = scalar_lea.vmem %s0, %s246
      %p248 = pneg %p39
      %p249 = pneg %p36
      %p250 = pneg %p60
      %p251 = pneg %p57
      %p252 = pneg %p81
      %p253 = pneg %p78
      %p254 = pneg %p102
      %p255 = pneg %p99
      %p256 = pneg %p123
      %p257 = pneg %p120
      %p258 = pneg %p144
      %p259 = pneg %p141
      %p260 = pneg %p165
      %p261 = pneg %p162
      %p262 = pneg %p191
      %p263 = pneg %p188
      %p264 = scmp.lt.s32.totalorder %s18, 1
      %s265 = scalar_select %p264, %s18, 1
      %s266 = smul.addr %s265, 4
      %s267 = smul.addr %s266, 8
      %s268 = scalar_lea.vmem %s7, %s267
      %p269 = scmp.lt.s32.totalorder %s18, 1
      %s270 = scalar_select %p269, %s18, 1
      %s271 = smul.addr %s270, 4
      %s272 = smul.addr %s271, 8
      %s273 = scalar_lea.vmem %s0, %s272
      %p274 = scmp.lt.s32.totalorder %s18, 1
      %s275 = scalar_select %p274, %s18, 1
      %s276 = smul.addr %s275, 4
      %s277 = smul.addr %s276, 8
      %s278 = scalar_lea.vmem %s7, %s277
      %280 = vst [vmem:[#allocation2] sm:$0xff] 0
      %281 = vst [vmem:[#allocation2 + $0x18] sm:$0xff] 0
      %v282 = vld [vmem:[%s273] sm:$0xff]
      %v283 = vld [vmem:[%s273 + $0x8] sm:$0xff]
      %v284 = vld [vmem:[%s273 + $0x10] sm:$0xff]
      %v285 = vld [vmem:[%s273 + $0x18] sm:$0xff]
      %v286 = vpack.c.bf16 %v284, %v282
      %v287 = vpack.c.bf16 %v285, %v283
      %288 = vst [vmem:[#allocation2 + $0x8] sm:$0xff] %v286
      %289 = vst [vmem:[#allocation2 + $0x10] sm:$0xff] %v287
      %v290 = vld [vmem:[#allocation2] sm:$0xff]
      %v291 = vld [vmem:[#allocation2 + $0x8] sm:$0xff]
      %v292 = vld [vmem:[#allocation2 + $0x10] sm:$0xff]
      %v293 = vld [vmem:[#allocation2 + $0x18] sm:$0xff]
      %v294 = vlaneseq
      %v295 = vand.u32 %v294, 127
      %v296 = vadd.s32 %v295, 128
      %v297 = vadd.s32 %v295, 256
      %vm298 = vcmp.lt.s32.totalorder %v295, 0
      %v299 = vsub.s32 0, %v295
      %v300 = vsel %vm298, %v299, %v295
      %v301 = vshrl.u32 %v300, 4
      %v302 = vand.u32 %v300, 15
      %v303 = vsub.s32 0, %v302
      %v304 = vsel %vm298, %v303, %v302
      %vm305 = vcmp.lt.s32.totalorder %v296, 0
      %v306 = vsub.s32 0, %v296
      %v307 = vsel %vm305, %v306, %v296
      %v308 = vshrl.u32 %v307, 4
      %v309 = vand.u32 %v307, 15
      %v310 = vsub.s32 0, %v309
      %v311 = vsel %vm305, %v310, %v309
      %vm312 = vcmp.lt.s32.totalorder %v297, 0
      %v313 = vsub.s32 0, %v297
      %v314 = vsel %vm312, %v313, %v297
      %v315 = vshrl.u32 %v314, 4
      %v316 = vand.u32 %v314, 15
      %v317 = vsub.s32 0, %v316
      %v318 = vsel %vm312, %v317, %v316
      %vm319 = vcmp.ne.s32.totalorder %v304, 0
      %vm320 = vcmp.ne.s32.totalorder %v311, 0
      %vm321 = vcmp.ne.s32.totalorder %v318, 0
      %vm322 = vcmp.lt.s32.totalorder %v304, 0
      %vm323 = vcmp.lt.s32.totalorder %v311, 0
      %vm324 = vcmp.lt.s32.totalorder %v318, 0
      %vm325 = vmand %vm322, %vm319
      %vm326 = vmand %vm323, %vm320
      %vm327 = vmand %vm324, %vm321
      %v328 = vadd.s32 %v304, 16
      %v329 = vadd.s32 %v311, 16
      %v330 = vadd.s32 %v318, 16
      %v331 = vsel %vm325, %v328, %v304
      %v332 = vsel %vm326, %v329, %v311
      %v333 = vsel %vm327, %v330, %v318
      %vm334 = vcmp.ne.s32.totalorder %v331, 0
      %vm335 = vcmp.ne.s32.totalorder %v332, 0
      %vm336 = vcmp.ne.s32.totalorder %v333, 0
      %v337 = vsel %vm334, 1, 0
      %v338 = vsel %vm335, 1, 0
      %v339 = vsel %vm336, 1, 0
      %v340 = vcvt.s32.f32 %v337
      %v341 = vcvt.s32.f32 %v338
      %v342 = vcvt.s32.f32 %v339
      %v343 = vpack.c.bf16 %v340, %v340
      %v344 = vpack.c.bf16 %v341, %v341
      %v345 = vpack.c.bf16 %v342, %v342
      %vm346 = vcmp.ne.s32.totalorder %v331, 15
      %vm347 = vcmp.ne.s32.totalorder %v332, 15
      %vm348 = vcmp.ne.s32.totalorder %v333, 15
      %v349 = vsel %vm346, 1, 0
      %v350 = vsel %vm347, 1, 0
      %v351 = vsel %vm348, 1, 0
      %v352 = vcvt.s32.f32 %v349
      %v353 = vcvt.s32.f32 %v350
      %v354 = vcvt.s32.f32 %v351
      %v355 = vpack.c.bf16 %v352, %v352
      %v356 = vpack.c.bf16 %v353, %v353
      %v357 = vpack.c.bf16 %v354, %v354
      %361 = vrot.lane.b32.xlu0 %v343, 111
      %v362 = vpop.permute.xlu0 %361
      %363 = vrot.lane.b32.xlu0 %v344, 111
      %v364 = vpop.permute.xlu0 %363
      %365 = vrot.lane.b32.xlu0 %v345, 111
      %v366 = vpop.permute.xlu0 %365
      %vm367 = vcmask 908288
      %v368 = vsel %vm367, %v362, %v364
      %v369 = vsel %vm367, %v364, %v366
      %v374 = vmul.bf16 %v290, %v362
      %v375 = vmul.bf16 %v291, %v368
      %v376 = vmul.bf16 %v292, %v369
      %v377 = vmul.bf16 %v293, %v366
      %381 = vrot.lane.b32.xlu0 %v355, 113
      %v382 = vpop.permute.xlu0 %381
      %383 = vrot.lane.b32.xlu0 %v356, 113
      %v384 = vpop.permute.xlu0 %383
      %385 = vrot.lane.b32.xlu0 %v357, 113
      %v386 = vpop.permute.xlu0 %385
      %vm387 = vcmask 924672
      %v388 = vsel %vm387, %v382, %v384
      %v389 = vsel %vm387, %v384, %v386
      %v394 = vmul.bf16 %v290, %v382
      %v395 = vmul.bf16 %v291, %v388
      %v396 = vmul.bf16 %v292, %v389
      %v397 = vmul.bf16 %v293, %v386
      %402 = vrot.lane.b32.xlu0 %v290, 127
      %v403 = vpop.permute.xlu0 %402
      %404 = vrot.lane.b32.xlu0 %v291, 127
      %v405 = vpop.permute.xlu0 %404
      %406 = vrot.lane.b32.xlu0 %v292, 127
      %v407 = vpop.permute.xlu0 %406
      %408 = vrot.lane.b32.xlu0 %v293, 127
      %v409 = vpop.permute.xlu0 %408
      %vm410 = vcmask 1039360
      %v411 = vsel %vm410, %v403, %v405
      %v412 = vsel %vm410, %v405, %v407
      %v413 = vsel %vm410, %v407, %v409
      %418 = vrot.lane.b32.xlu0 %v394, 126
      %v419 = vpop.permute.xlu0 %418
      %420 = vrot.lane.b32.xlu0 %v395, 126
      %v421 = vpop.permute.xlu0 %420
      %422 = vrot.lane.b32.xlu0 %v396, 126
      %v423 = vpop.permute.xlu0 %422
      %424 = vrot.lane.b32.xlu0 %v397, 126
      %v425 = vpop.permute.xlu0 %424
      %vm426 = vcmask 1031168
      %v427 = vsel %vm426, %v419, %v421
      %v428 = vsel %vm426, %v421, %v423
      %v429 = vsel %vm426, %v423, %v425
      %v430 = vld [vmem:[%s1] sm:$0xf]
      %v431 = vld [vmem:[%s1 + $0x4] sm:$0xf]
      %v432 = vld [vmem:[%s1 + $0x8] sm:$0xf]
      %v433 = vld [vmem:[%s1 + $0xc] sm:$0xf]
      %s434 = scalar_lea.vmem %s1, 16
      %v435 = vld [vmem:[%s434] sm:$0xf]
      %v436 = vld [vmem:[%s434 + $0x4] sm:$0xf]
      %v437 = vld [vmem:[%s434 + $0x8] sm:$0xf]
      %v438 = vld [vmem:[%s434 + $0xc] sm:$0xf]
      %v443 = vunpack.c.l.b16 %v435
      %v444 = vunpack.c.l.b16 %v436
      %v445 = vunpack.c.l.b16 %v437
      %v446 = vunpack.c.l.b16 %v438
      %v447 = vpack.c.b16 %v444, %v443
      %v448 = vpack.c.b16 %v446, %v445
      %452 = vrot.lane.b32.xlu0 %v374, 1
      %v453 = vpop.permute.xlu0 %452
      %454 = vrot.lane.b32.xlu0 %v375, 1
      %v455 = vpop.permute.xlu0 %454
      %456 = vrot.lane.b32.xlu0 %v376, 1
      %v457 = vpop.permute.xlu0 %456
      %458 = vrot.lane.b32.xlu0 %v411, 1
      %v459 = vpop.permute.xlu0 %458
      %460 = vrot.lane.b32.xlu0 %v412, 1
      %v461 = vpop.permute.xlu0 %460
      %462 = vrot.lane.b32.xlu0 %v413, 1
      %v463 = vpop.permute.xlu0 %462
      %464 = vrot.lane.b32.xlu0 %v427, 1
      %v465 = vpop.permute.xlu0 %464
      %466 = vrot.lane.b32.xlu0 %v428, 1
      %v467 = vpop.permute.xlu0 %466
      %468 = vrot.lane.b32.xlu0 %v429, 1
      %v469 = vpop.permute.xlu0 %468
      %vm470 = vcmask 7168
      %v471 = vsel %vm470, %v453, %v455
      %v472 = vsel %vm470, %v455, %v457
      %v473 = vsel %vm470, %v459, %v461
      %v474 = vsel %vm470, %v461, %v463
      %v475 = vsel %vm470, %v465, %v467
      %v476 = vsel %vm470, %v467, %v469
      %vm483 = vcmask 392192
      %v485 = vsel %vm483, %v447, 0
      %v488 = vsel %vm483, %v448, 0
      %490 = vmatprep.subr.bf16.mxu0 %v472
      %491 = vmatpush1.bf16.msra.mxu0 %v471
      %492 = vmatprep.subr.bf16.mxu0 %v474
      %493 = vmatpush1.bf16.msra.mxu0 %v473
      %494 = vmatprep.subr.bf16.mxu0 %v476
      %495 = vmatpush1.bf16.msra.mxu0 %v475
      %496 = vmatprep.subr.bf16.mxu0 0
      %497 = vmatpush1.bf16.msra.mxu0 0
      %498 = vmatprep.subr.bf16.mxu0 0
      %499 = vmatpush1.bf16.msra.mxu0 0
      %500 = vmatprep.subr.bf16.mxu0 0
      %501 = vmatpush1.bf16.msra.mxu0 0
      %502 = vmatprep.subr.bf16.mxu0 0
      %503 = vmatpush1.bf16.msra.mxu0 0
      %504 = vmatprep.subr.bf16.mxu0 0
      %505 = vmatpush1.bf16.msra.mxu0 0
      %506 = vmatprep.subr.bf16.mxu0 0
      %507 = vmatpush1.bf16.msra.mxu0 0
      %508 = vmatprep.subr.bf16.mxu0 0
      %509 = vmatpush1.bf16.msra.mxu0 0
      %510 = vmatprep.subr.bf16.mxu0 0
      %511 = vmatpush1.bf16.msra.mxu0 0
      %512 = vmatprep.subr.bf16.mxu0 0
      %513 = vmatpush1.bf16.msra.mxu0 0
      %514 = vmatprep.subr.bf16.mxu0 0
      %515 = vmatpush1.bf16.msra.mxu0 0
      %516 = vmatprep.subr.bf16.mxu0 0
      %517 = vmatpush1.bf16.msra.mxu0 0
      %518 = vmatprep.subr.bf16.mxu0 0
      %519 = vmatpush1.bf16.msra.mxu0 0
      %520 = vmatprep.subr.bf16.mxu0 0
      %521 = vmatpush1.bf16.msra.mxu0 0
      %522 = vmatprep.mubr.bf16.mxu0 0
      %523 = vmatmul.mubr.bf16.gmra.mrb[0].mxu0 %v485
      %v524 = vpop.f32.mrb[0].mxu0
      %v525 = vadd.f32 0.0, %v524
      %v526 = vpop.f32.mrb[0].mxu0
      %v527 = vadd.f32 0.0, %v526
      %v528 = vpop.f32.mrb[0].mxu0
      %v529 = vadd.f32 0.0, %v528
      %v530 = vpop.f32.mrb[0].mxu0
      %v531 = vadd.f32 0.0, %v530
      %532 = vmatprep.mubr.bf16.mxu0 0
      %533 = vmatmul.mubr.bf16.gmra.mrb[0].mxu0 %v488
      %v534 = vpop.f32.mrb[0].mxu0
      %v535 = vadd.f32 0.0, %v534
      %v536 = vpop.f32.mrb[0].mxu0
      %v537 = vadd.f32 0.0, %v536
      %v538 = vpop.f32.mrb[0].mxu0
      %v539 = vadd.f32 0.0, %v538
      %v540 = vpop.f32.mrb[0].mxu0
      %v541 = vadd.f32 0.0, %v540
      %542 = vdwg.mxu0
      %v547 = vunpack.c.l.b16 %v430
      %v548 = vunpack.c.l.b16 %v431
      %v549 = vunpack.c.l.b16 %v432
      %v550 = vunpack.c.l.b16 %v433
      %v551 = vpack.c.b16 %v548, %v547
      %v552 = vpack.c.b16 %v550, %v549
      %553 = vrot.lane.b32.xlu0 %v374, 17
      %v554 = vpop.permute.xlu0 %553
      %555 = vrot.lane.b32.xlu0 %v375, 17
      %v556 = vpop.permute.xlu0 %555
      %557 = vrot.lane.b32.xlu0 %v376, 17
      %v558 = vpop.permute.xlu0 %557
      %559 = vrot.lane.b32.xlu0 %v411, 17
      %v560 = vpop.permute.xlu0 %559
      %561 = vrot.lane.b32.xlu0 %v412, 17
      %v562 = vpop.permute.xlu0 %561
      %563 = vrot.lane.b32.xlu0 %v413, 17
      %v564 = vpop.permute.xlu0 %563
      %565 = vrot.lane.b32.xlu0 %v427, 17
      %v566 = vpop.permute.xlu0 %565
      %567 = vrot.lane.b32.xlu0 %v428, 17
      %v568 = vpop.permute.xlu0 %567
      %569 = vrot.lane.b32.xlu0 %v429, 17
      %v570 = vpop.permute.xlu0 %569
      %vm571 = vcmask 138240
      %v572 = vsel %vm571, %v554, %v556
      %v573 = vsel %vm571, %v556, %v558
      %v574 = vsel %vm571, %v560, %v562
      %v575 = vsel %vm571, %v562, %v564
      %v576 = vsel %vm571, %v566, %v568
      %v577 = vsel %vm571, %v568, %v570
      %v585 = vsel %vm483, %v551, 0
      %v588 = vsel %vm483, %v552, 0
      %590 = vmatprep.subr.bf16.mxu0 %v573
      %591 = vmatpush1.bf16.msra.mxu0 %v572
      %592 = vmatprep.subr.bf16.mxu0 %v575
      %593 = vmatpush1.bf16.msra.mxu0 %v574
      %594 = vmatprep.subr.bf16.mxu0 %v577
      %595 = vmatpush1.bf16.msra.mxu0 %v576
      %596 = vmatprep.subr.bf16.mxu0 0
      %597 = vmatpush1.bf16.msra.mxu0 0
      %598 = vmatprep.subr.bf16.mxu0 0
      %599 = vmatpush1.bf16.msra.mxu0 0
      %600 = vmatprep.subr.bf16.mxu0 0
      %601 = vmatpush1.bf16.msra.mxu0 0
      %602 = vmatprep.subr.bf16.mxu0 0
      %603 = vmatpush1.bf16.msra.mxu0 0
      %604 = vmatprep.subr.bf16.mxu0 0
      %605 = vmatpush1.bf16.msra.mxu0 0
      %606 = vmatprep.subr.bf16.mxu0 0
      %607 = vmatpush1.bf16.msra.mxu0 0
      %608 = vmatprep.subr.bf16.mxu0 0
      %609 = vmatpush1.bf16.msra.mxu0 0
      %610 = vmatprep.subr.bf16.mxu0 0
      %611 = vmatpush1.bf16.msra.mxu0 0
      %612 = vmatprep.subr.bf16.mxu0 0
      %613 = vmatpush1.bf16.msra.mxu0 0
      %614 = vmatprep.subr.bf16.mxu0 0
      %615 = vmatpush1.bf16.msra.mxu0 0
      %616 = vmatprep.subr.bf16.mxu0 0
      %617 = vmatpush1.bf16.msra.mxu0 0
      %618 = vmatprep.subr.bf16.mxu0 0
      %619 = vmatpush1.bf16.msra.mxu0 0
      %620 = vmatprep.subr.bf16.mxu0 0
      %621 = vmatpush1.bf16.msra.mxu0 0
      %622 = vmatprep.mubr.bf16.mxu0 0
      %623 = vmatmul.mubr.bf16.gmra.mrb[0].mxu0 %v585
      %v624 = vpop.f32.mrb[0].mxu0
      %v625 = vadd.f32 %v525, %v624
      %v626 = vpop.f32.mrb[0].mxu0
      %v627 = vadd.f32 %v527, %v626
      %v628 = vpop.f32.mrb[0].mxu0
      %v629 = vadd.f32 %v529, %v628
      %v630 = vpop.f32.mrb[0].mxu0
      %v631 = vadd.f32 %v531, %v630
      %632 = vmatprep.mubr.bf16.mxu0 0
      %633 = vmatmul.mubr.bf16.gmra.mrb[0].mxu0 %v588
      %v634 = vpop.f32.mrb[0].mxu0
      %v635 = vadd.f32 %v535, %v634
      %v636 = vpop.f32.mrb[0].mxu0
      %v637 = vadd.f32 %v537, %v636
      %v638 = vpop.f32.mrb[0].mxu0
      %v639 = vadd.f32 %v539, %v638
      %v640 = vpop.f32.mrb[0].mxu0
      %v641 = vadd.f32 %v541, %v640
      %642 = vdwg.mxu0
      %s643 = scalar_lea.vmem %s1, 32
      %v644 = vld [vmem:[%s643] sm:$0xf]
      %v645 = vld [vmem:[%s643 + $0x4] sm:$0xf]
      %v646 = vld [vmem:[%s643 + $0x8] sm:$0xf]
      %v647 = vld [vmem:[%s643 + $0xc] sm:$0xf]
      %v652 = vunpack.c.l.b16 %v644
      %v653 = vunpack.c.l.b16 %v645
      %v654 = vunpack.c.l.b16 %v646
      %v655 = vunpack.c.l.b16 %v647
      %v656 = vpack.c.b16 %v653, %v652
      %v657 = vpack.c.b16 %v655, %v654
      %659 = vrot.lane.b32.xlu0 %v375, 113
      %v660 = vpop.permute.xlu0 %659
      %661 = vrot.lane.b32.xlu0 %v376, 113
      %v662 = vpop.permute.xlu0 %661
      %663 = vrot.lane.b32.xlu0 %v377, 113
      %v664 = vpop.permute.xlu0 %663
      %665 = vrot.lane.b32.xlu0 %v412, 113
      %v666 = vpop.permute.xlu0 %665
      %667 = vrot.lane.b32.xlu0 %v413, 113
      %v668 = vpop.permute.xlu0 %667
      %669 = vrot.lane.b32.xlu0 %v409, 113
      %v670 = vpop.permute.xlu0 %669
      %671 = vrot.lane.b32.xlu0 %v428, 113
      %v672 = vpop.permute.xlu0 %671
      %673 = vrot.lane.b32.xlu0 %v429, 113
      %v674 = vpop.permute.xlu0 %673
      %675 = vrot.lane.b32.xlu0 %v425, 113
      %v676 = vpop.permute.xlu0 %675
      %v677 = vsel %vm387, %v660, %v662
      %v678 = vsel %vm387, %v662, %v664
      %v679 = vsel %vm387, %v666, %v668
      %v680 = vsel %vm387, %v668, %v670
      %v681 = vsel %vm387, %v672, %v674
      %v682 = vsel %vm387, %v674, %v676
      %v690 = vsel %vm483, %v656, 0
      %v693 = vsel %vm483, %v657, 0
      %695 = vmatprep.subr.bf16.mxu0 %v678
      %696 = vmatpush1.bf16.msra.mxu0 %v677
      %697 = vmatprep.subr.bf16.mxu0 %v680
      %698 = vmatpush1.bf16.msra.mxu0 %v679
      %699 = vmatprep.subr.bf16.mxu0 %v682
      %700 = vmatpush1.bf16.msra.mxu0 %v681
      %701 = vmatprep.subr.bf16.mxu0 0
      %702 = vmatpush1.bf16.msra.mxu0 0
      %703 = vmatprep.subr.bf16.mxu0 0
      %704 = vmatpush1.bf16.msra.mxu0 0
      %705 = vmatprep.subr.bf16.mxu0 0
      %706 = vmatpush1.bf16.msra.mxu0 0
      %707 = vmatprep.subr.bf16.mxu0 0
      %708 = vmatpush1.bf16.msra.mxu0 0
      %709 = vmatprep.subr.bf16.mxu0 0
      %710 = vmatpush1.bf16.msra.mxu0 0
      %711 = vmatprep.subr.bf16.mxu0 0
      %712 = vmatpush1.bf16.msra.mxu0 0
      %713 = vmatprep.subr.bf16.mxu0 0
      %714 = vmatpush1.bf16.msra.mxu0 0
      %715 = vmatprep.subr.bf16.mxu0 0
      %716 = vmatpush1.bf16.msra.mxu0 0
      %717 = vmatprep.subr.bf16.mxu0 0
      %718 = vmatpush1.bf16.msra.mxu0 0
      %719 = vmatprep.subr.bf16.mxu0 0
      %720 = vmatpush1.bf16.msra.mxu0 0
      %721 = vmatprep.subr.bf16.mxu0 0
      %722 = vmatpush1.bf16.msra.mxu0 0
      %723 = vmatprep.subr.bf16.mxu0 0
      %724 = vmatpush1.bf16.msra.mxu0 0
      %725 = vmatprep.subr.bf16.mxu0 0
      %726 = vmatpush1.bf16.msra.mxu0 0
      %727 = vmatprep.mubr.bf16.mxu0 0
      %728 = vmatmul.mubr.bf16.gmra.mrb[0].mxu0 %v690
      %v729 = vpop.f32.mrb[0].mxu0
      %v730 = vadd.f32 0.0, %v729
      %v731 = vpop.f32.mrb[0].mxu0
      %v732 = vadd.f32 0.0, %v731
      %v733 = vpop.f32.mrb[0].mxu0
      %v734 = vadd.f32 0.0, %v733
      %v735 = vpop.f32.mrb[0].mxu0
      %v736 = vadd.f32 0.0, %v735
      %737 = vmatprep.mubr.bf16.mxu0 0
      %738 = vmatmul.mubr.bf16.gmra.mrb[0].mxu0 %v693
      %v739 = vpop.f32.mrb[0].mxu0
      %v740 = vadd.f32 0.0, %v739
      %v741 = vpop.f32.mrb[0].mxu0
      %v742 = vadd.f32 0.0, %v741
      %v743 = vpop.f32.mrb[0].mxu0
      %v744 = vadd.f32 0.0, %v743
      %v745 = vpop.f32.mrb[0].mxu0
      %v746 = vadd.f32 0.0, %v745
      %747 = vdwg.mxu0
      %v748 = vadd.f32 %v625, %v730
      %v749 = vadd.f32 %v627, %v732
      %v750 = vadd.f32 %v629, %v734
      %v751 = vadd.f32 %v631, %v736
      %v752 = vadd.f32 %v635, %v740
      %v753 = vadd.f32 %v637, %v742
      %v754 = vadd.f32 %v639, %v744
      %v755 = vadd.f32 %v641, %v746
      %v756 = vadd.f32 %v748, %v749
      %757 = vadd.xlane.f32.xlu0 %v756
      %v758 = vpop.xlane.xlu0 %757
      %v759 = vadd.f32 %v750, %v751
      %760 = vadd.xlane.f32.xlu0 %v759
      %v761 = vpop.xlane.xlu0 %760
      %v762 = vadd.f32 %v752, %v753
      %763 = vadd.xlane.f32.xlu0 %v762
      %v764 = vpop.xlane.xlu0 %763
      %v765 = vadd.f32 %v754, %v755
      %766 = vadd.xlane.f32.xlu0 %v765
      %v767 = vpop.xlane.xlu0 %766
      %v768 = vmul.f32 %v748, %v748
      %v769 = vmul.f32 %v749, %v749
      %v770 = vmul.f32 %v750, %v750
      %v771 = vmul.f32 %v751, %v751
      %v772 = vmul.f32 %v752, %v752
      %v773 = vmul.f32 %v753, %v753
      %v774 = vmul.f32 %v754, %v754
      %v775 = vmul.f32 %v755, %v755
      %v776 = vadd.f32 %v768, %v769
      %777 = vadd.xlane.f32.xlu0 %v776
      %v778 = vpop.xlane.xlu0 %777
      %v779 = vadd.f32 %v770, %v771
      %780 = vadd.xlane.f32.xlu0 %v779
      %v781 = vpop.xlane.xlu0 %780
      %v782 = vadd.f32 %v772, %v773
      %783 = vadd.xlane.f32.xlu0 %v782
      %v784 = vpop.xlane.xlu0 %783
      %v785 = vadd.f32 %v774, %v775
      %786 = vadd.xlane.f32.xlu0 %v785
      %v787 = vpop.xlane.xlu0 %786
      %v788 = vld [vmem:[%s2] sm:$0xff]
      %v789 = vld [vmem:[%s2 + $0x8] sm:$0xff]
      %v790 = vld [vmem:[%s2 + $0x10] sm:$0xff]
      %v791 = vld [vmem:[%s2 + $0x18] sm:$0xff]
      %vm792 = vcmask 7168
      %v793 = vsel %vm792, %v758, %v778
      %v794 = vsel %vm792, %v761, %v781
      %v795 = vsel %vm792, %v764, %v784
      %v796 = vsel %vm792, %v767, %v787
      %vm797 = vcmask 261120
      %v799 = vsel %vm797, %v788, 0
      %v802 = vsel %vm797, %v789, 0
      %v805 = vsel %vm797, %v790, 0
      %v808 = vsel %vm797, %v791, 0
      %810 = vmatprep.subr.mxu0 0.0
      %811 = vmatpush1.msra.mxu0 %v793
      %812 = vmatprep.subr.mxu0 0.0
      %813 = vmatpush1.msra.mxu0 %v794
      %814 = vmatprep.subr.mxu0 0.0
      %815 = vmatpush1.msra.mxu0 %v795
      %816 = vmatprep.subr.mxu0 0.0
      %817 = vmatpush1.msra.mxu0 %v796
      %818 = vmatprep.subr.mxu0 0.0
      %819 = vmatpush1.msra.mxu0 0.0
      %820 = vmatprep.subr.mxu0 0.0
      %821 = vmatpush1.msra.mxu0 0.0
      %822 = vmatprep.subr.mxu0 0.0
      %823 = vmatpush1.msra.mxu0 0.0
      %824 = vmatprep.subr.mxu0 0.0
      %825 = vmatpush1.msra.mxu0 0.0
      %826 = vmatprep.subr.mxu0 0.0
      %827 = vmatpush1.msra.mxu0 0.0
      %828 = vmatprep.subr.mxu0 0.0
      %829 = vmatpush1.msra.mxu0 0.0
      %830 = vmatprep.subr.mxu0 0.0
      %831 = vmatpush1.msra.mxu0 0.0
      %832 = vmatprep.subr.mxu0 0.0
      %833 = vmatpush1.msra.mxu0 0.0
      %834 = vmatprep.subr.mxu0 0.0
      %835 = vmatpush1.msra.mxu0 0.0
      %836 = vmatprep.subr.mxu0 0.0
      %837 = vmatpush1.msra.mxu0 0.0
      %838 = vmatprep.subr.mxu0 0.0
      %839 = vmatpush1.msra.mxu0 0.0
      %840 = vmatprep.subr.mxu0 0.0
      %841 = vmatpush1.msra.mxu0 0.0
      %842 = vmatprep.subr.mxu0 0.0
      %843 = vmatpush1.msra.mxu0 0.0
      %844 = vmatprep.subr.mxu0 0.0
      %845 = vmatpush1.msra.mxu0 0.0
      %846 = vmatprep.subr.mxu0 0.0
      %847 = vmatpush1.msra.mxu0 0.0
      %848 = vmatprep.subr.mxu0 0.0
      %849 = vmatpush1.msra.mxu0 0.0
      %850 = vmatprep.subr.mxu0 0.0
      %851 = vmatpush1.msra.mxu0 0.0
      %852 = vmatprep.subr.mxu0 0.0
      %853 = vmatpush1.msra.mxu0 0.0
      %854 = vmatprep.subr.mxu0 0.0
      %855 = vmatpush1.msra.mxu0 0.0
      %856 = vmatprep.subr.mxu0 0.0
      %857 = vmatpush1.msra.mxu0 0.0
      %858 = vmatprep.subr.mxu0 0.0
      %859 = vmatpush1.msra.mxu0 0.0
      %860 = vmatprep.subr.mxu0 0.0
      %861 = vmatpush1.msra.mxu0 0.0
      %862 = vmatprep.subr.mxu0 0.0
      %863 = vmatpush1.msra.mxu0 0.0
      %864 = vmatprep.subr.mxu0 0.0
      %865 = vmatpush1.msra.mxu0 0.0
      %866 = vmatprep.subr.mxu0 0.0
      %867 = vmatpush1.msra.mxu0 0.0
      %868 = vmatprep.subr.mxu0 0.0
      %869 = vmatpush1.msra.mxu0 0.0
      %870 = vmatprep.subr.mxu0 0.0
      %871 = vmatpush1.msra.mxu0 0.0
      %872 = vmatprep.subr.mxu0 0.0
      %873 = vmatpush1.msra.mxu0 0.0
      %874 = vmatprep.mubr.f32.mxu0 0.0
      %875 = vmatmul.mubr.f32.gmra.mrb[0].mxu0 %v799
      %v876 = vpop.f32.mrb[0].mxu0
      %v877 = vadd.f32 0.0, %v876
      %v878 = vpop.f32.mrb[0].mxu0
      %879 = vmatprep.mubr.f32.mxu0 0.0
      %880 = vmatmul.mubr.f32.gmra.mrb[0].mxu0 %v802
      %v881 = vpop.f32.mrb[0].mxu0
      %v882 = vadd.f32 0.0, %v881
      %v883 = vpop.f32.mrb[0].mxu0
      %884 = vmatprep.mubr.f32.mxu0 0.0
      %885 = vmatmul.mubr.f32.gmra.mrb[0].mxu0 %v805
      %v886 = vpop.f32.mrb[0].mxu0
      %v887 = vadd.f32 0.0, %v886
      %v888 = vpop.f32.mrb[0].mxu0
      %889 = vmatprep.mubr.f32.mxu0 0.0
      %890 = vmatmul.mubr.f32.gmra.mrb[0].mxu0 %v808
      %v891 = vpop.f32.mrb[0].mxu0
      %v892 = vadd.f32 0.0, %v891
      %v893 = vpop.f32.mrb[0].mxu0
      %894 = vdwg.mxu0
      %v895 = vmul.f32 %v877, %v877
      %v896 = vmul.f32 %v882, %v882
      %v897 = vmul.f32 %v887, %v887
      %v898 = vmul.f32 %v892, %v892
      %903 = vrot.lane.b32.xlu0 %v895, 1
      %v904 = vpop.permute.xlu0 %903
      %905 = vrot.lane.b32.xlu0 %v896, 1
      %v906 = vpop.permute.xlu0 %905
      %907 = vrot.lane.b32.xlu0 %v897, 1
      %v908 = vpop.permute.xlu0 %907
      %909 = vrot.lane.b32.xlu0 %v898, 1
      %v910 = vpop.permute.xlu0 %909
      %v915 = vsub.f32 %v877, %v904
      %v916 = vsub.f32 %v882, %v906
      %v917 = vsub.f32 %v887, %v908
      %v918 = vsub.f32 %v892, %v910
      %v919 = vmax.f32 %v915, 0.0
      %v920 = vmax.f32 %v916, 0.0
      %v921 = vmax.f32 %v917, 0.0
      %v922 = vmax.f32 %v918, 0.0
      %v923 = vadd.f32 %v919, 1e-05
      %v924 = vadd.f32 %v920, 1e-05
      %v925 = vadd.f32 %v921, 1e-05
      %v926 = vadd.f32 %v922, 1e-05
      %v927 = vrsqrt.pop %v923
      %v928 = vrsqrt.pop %v924
      %v929 = vrsqrt.pop %v925
      %v930 = vrsqrt.pop %v926
      %v931 = vld [vmem:[%s3] sm:$0xff]
      %v932 = vld [vmem:[%s3 + $0x8] sm:$0xff]
      %v933 = vld [vmem:[%s3 + $0x10] sm:$0xff]
      %v934 = vld [vmem:[%s3 + $0x18] sm:$0xff]
      %939 = vrot.lane.b32.xlu0 %v931, 1
      %v940 = vpop.permute.xlu0 %939
      %941 = vrot.lane.b32.xlu0 %v932, 1
      %v942 = vpop.permute.xlu0 %941
      %943 = vrot.lane.b32.xlu0 %v933, 1
      %v944 = vpop.permute.xlu0 %943
      %945 = vrot.lane.b32.xlu0 %v934, 1
      %v946 = vpop.permute.xlu0 %945
      %v951 = vmul.f32 %v927, %v940
      %v952 = vmul.f32 %v928, %v942
      %v953 = vmul.f32 %v929, %v944
      %v954 = vmul.f32 %v930, %v946
      %v955 = vld [vmem:[%s4] sm:$0xff]
      %v956 = vld [vmem:[%s4 + $0x8] sm:$0xff]
      %v957 = vld [vmem:[%s4 + $0x10] sm:$0xff]
      %v958 = vld [vmem:[%s4 + $0x18] sm:$0xff]
      %963 = vrot.lane.b32.xlu0 %v951, 127
      %v964 = vpop.permute.xlu0 %963
      %965 = vrot.lane.b32.xlu0 %v952, 127
      %v966 = vpop.permute.xlu0 %965
      %967 = vrot.lane.b32.xlu0 %v953, 127
      %v968 = vpop.permute.xlu0 %967
      %969 = vrot.lane.b32.xlu0 %v954, 127
      %v970 = vpop.permute.xlu0 %969
      %v975 = vmul.f32 %v877, %v964
      %v976 = vmul.f32 %v882, %v966
      %v977 = vmul.f32 %v887, %v968
      %v978 = vmul.f32 %v892, %v970
      %v979 = vsub.f32 %v955, %v975
      %v980 = vsub.f32 %v956, %v976
      %v981 = vsub.f32 %v957, %v977
      %v982 = vsub.f32 %v958, %v978
      %983 = vset.pattern.permute.xlu0 1
      %984 = vperm.xlu0 %983, %v951
      %v985 = vpop.permute.xlu0 %984
      %987 = vset.pattern.permute.xlu0 1
      %988 = vperm.xlu0 %987, %v952
      %v989 = vpop.permute.xlu0 %988
      %991 = vset.pattern.permute.xlu0 1
      %992 = vperm.xlu0 %991, %v953
      %v993 = vpop.permute.xlu0 %992
      %995 = vset.pattern.permute.xlu0 1
      %996 = vperm.xlu0 %995, %v954
      %v997 = vpop.permute.xlu0 %996
      %v999 = vmul.f32 %v748, %v985
      %v1000 = vmul.f32 %v749, %v985
      %v1001 = vmul.f32 %v750, %v989
      %v1002 = vmul.f32 %v751, %v989
      %v1003 = vmul.f32 %v752, %v993
      %v1004 = vmul.f32 %v753, %v993
      %v1005 = vmul.f32 %v754, %v997
      %v1006 = vmul.f32 %v755, %v997
      %1008 = vset.pattern.permute.xlu0 0
      %1009 = vperm.xlu0 %1008, %v979
      %v1010 = vpop.permute.xlu0 %1009
      %1013 = vset.pattern.permute.xlu0 0
      %1014 = vperm.xlu0 %1013, %v980
      %v1015 = vpop.permute.xlu0 %1014
      %1018 = vset.pattern.permute.xlu0 0
      %1019 = vperm.xlu0 %1018, %v981
      %v1020 = vpop.permute.xlu0 %1019
      %1023 = vset.pattern.permute.xlu0 0
      %1024 = vperm.xlu0 %1023, %v982
      %v1025 = vpop.permute.xlu0 %1024
      %v1027 = vadd.f32 %v999, %v1010
      %v1028 = vadd.f32 %v1000, %v1010
      %v1029 = vadd.f32 %v1001, %v1015
      %v1030 = vadd.f32 %v1002, %v1015
      %v1031 = vadd.f32 %v1003, %v1020
      %v1032 = vadd.f32 %v1004, %v1020
      %v1033 = vadd.f32 %v1005, %v1025
      %v1034 = vadd.f32 %v1006, %v1025
      %v1035 = vmax.f32 %v1027, 0.0
      %v1036 = vmax.f32 %v1028, 0.0
      %v1037 = vmax.f32 %v1029, 0.0
      %v1038 = vmax.f32 %v1030, 0.0
      %v1039 = vmax.f32 %v1031, 0.0
      %v1040 = vmax.f32 %v1032, 0.0
      %v1041 = vmax.f32 %v1033, 0.0
      %v1042 = vmax.f32 %v1034, 0.0
      %v1043 = vld [vmem:[%s5] sm:$0xf]
      %v1044 = vld [vmem:[%s5 + $0x4] sm:$0xf]
      %v1045 = vpack.c.bf16 %v1037, %v1035
      %v1046 = vpack.c.bf16 %v1038, %v1036
      %v1047 = vpack.c.bf16 %v1041, %v1039
      %v1048 = vpack.c.bf16 %v1042, %v1040
      %v1049 = vld [vmem:[%s6] sm:$0xff]
      %v1050 = vld [vmem:[%s6 + $0x8] sm:$0xff]
      %1052 = vset.pattern.permute.xlu0 0
      %1053 = vperm.xlu0 %1052, %v1049
      %v1054 = vpop.permute.xlu0 %1053
      %1057 = vset.pattern.permute.xlu0 0
      %1058 = vperm.xlu0 %1057, %v1050
      %v1059 = vpop.permute.xlu0 %1058
      %v1063 = vunpack.c.l.b16 %v1043
      %v1064 = vunpack.c.l.b16 %v1044
      %v1065 = vpack.c.b16 %v1064, %v1063
      %v1067 = vsel %vm797, %v1065, 0
      %1069 = vmatprep.subr.bf16.mxu0 %v1046
      %1070 = vmatpush1.bf16.msra.mxu0 %v1045
      %1071 = vmatprep.subr.bf16.mxu0 %v1048
      %1072 = vmatpush1.bf16.msra.mxu0 %v1047
      %1073 = vmatprep.subr.bf16.mxu0 0
      %1074 = vmatpush1.bf16.msra.mxu0 0
      %1075 = vmatprep.subr.bf16.mxu0 0
      %1076 = vmatpush1.bf16.msra.mxu0 0
      %1077 = vmatprep.subr.bf16.mxu0 0
      %1078 = vmatpush1.bf16.msra.mxu0 0
      %1079 = vmatprep.subr.bf16.mxu0 0
      %1080 = vmatpush1.bf16.msra.mxu0 0
      %1081 = vmatprep.subr.bf16.mxu0 0
      %1082 = vmatpush1.bf16.msra.mxu0 0
      %1083 = vmatprep.subr.bf16.mxu0 0
      %1084 = vmatpush1.bf16.msra.mxu0 0
      %1085 = vmatprep.subr.bf16.mxu0 0
      %1086 = vmatpush1.bf16.msra.mxu0 0
      %1087 = vmatprep.subr.bf16.mxu0 0
      %1088 = vmatpush1.bf16.msra.mxu0 0
      %1089 = vmatprep.subr.bf16.mxu0 0
      %1090 = vmatpush1.bf16.msra.mxu0 0
      %1091 = vmatprep.subr.bf16.mxu0 0
      %1092 = vmatpush1.bf16.msra.mxu0 0
      %1093 = vmatprep.subr.bf16.mxu0 0
      %1094 = vmatpush1.bf16.msra.mxu0 0
      %1095 = vmatprep.subr.bf16.mxu0 0
      %1096 = vmatpush1.bf16.msra.mxu0 0
      %1097 = vmatprep.subr.bf16.mxu0 0
      %1098 = vmatpush1.bf16.msra.mxu0 0
      %1099 = vmatprep.subr.bf16.mxu0 0
      %1100 = vmatpush1.bf16.msra.mxu0 0
      %1101 = vmatprep.mubr.bf16.mxu0 0
      %1102 = vmatmul.mubr.bf16.gmra.mrb[0].mxu0 %v1067
      %v1103 = vpop.f32.mrb[0].mxu0
      %v1104 = vadd.f32 %v1054, %v1103
      %v1105 = vpop.f32.mrb[0].mxu0
      %v1106 = vadd.f32 %v1054, %v1105
      %v1107 = vpop.f32.mrb[0].mxu0
      %v1108 = vadd.f32 %v1059, %v1107
      %v1109 = vpop.f32.mrb[0].mxu0
      %v1110 = vadd.f32 %v1059, %v1109
      %1111 = vdwg.mxu0
      %1112 = vst [vmem:[%s278] sm:$0xff] %v1104
      %1113 = vst [vmem:[%s278 + $0x8] sm:$0xff] %v1106
      %1114 = vst [vmem:[%s278 + $0x10] sm:$0xff] %v1108
      %1115 = vst [vmem:[%s278 + $0x18] sm:$0xff] %v1110
      %p1116 = scmp.lt.s32.totalorder %s18, 1
      %s1117 = scalar_select %p1116, %s18, 1
      %s1118 = smul.addr %s1117, 4
      %s1119 = smul.addr %s1118, 8
      %s1120 = scalar_lea.vmem %s7, %s1119
      // Predicated region
      $region49: #{_forward_impl.1} parent=47 // pred_check
        %p1121 = pneg %p188
      $region50: #{_forward_impl.1} parent=47 // pred_check_branch
        %1123 = sbr.rel (%p1121) target = $region52
      $region51: #{_forward_impl.1} parent=47 // pred_region
        _
      $region52: #{_forward_impl.1} parent=47 // pred_fallthru
        _
    $region48: #{_forward_impl.1} parent=5 // pred_fallthru
      _
    %p1124 = scmp.le.s32.totalorder 2, %s13
    // Predicated region
    $region53: #{_forward_impl.1} parent=5 // pred_check
      %p1125 = pneg %p1124
    $region54: #{_forward_impl.1} parent=5 // pred_check_branch
      %1127 = sbr.rel (%p1125) target = $region56
    $region55: #{_forward_impl.1} parent=5 // pred_region
      %s1128 = ssub.s32 %s13, 2
      // Predicated region
      $region57: #{_forward_impl.1} parent=55 // pred_check
        %p1129 = pneg %p194
      $region58: #{_forward_impl.1} parent=55 // pred_check_branch
        %1131 = sbr.rel (%p1129) target = $region60
      $region59: #{_forward_impl.1} parent=55 // pred_region
        %p1132 = scmp.lt.s32.totalorder %s19, 1
        %s1133 = scalar_select %p1132, %s19, 1
        %s1134 = smul.addr %s1133, 4
        %s1135 = smul.addr %s1134, 8
        %s1136 = scalar_lea.vmem %s7, %s1135
      $region60: #{_forward_impl.1} parent=55 // pred_fallthru
        _
    $region56: #{_forward_impl.1} parent=5 // pred_fallthru
      _
  $region6: #{_forward_impl.1} parent=0 // loop_footer
    %s17 = sadd.s32 1, %s13
  $region7: #{_forward_impl.1} parent=0 // loop_footer_branch
    %12 = sbr.rel target = $region3
  $region8: #{_forward_impl.1} parent=0 // loop_exit
    _

</llo_original>
